<compile_context>
chip_gen: v7x
topology: tpu7x:2x2x1
jax: 0.10.0
libtpu: 0.0.40
codegen_flags: <defaults>
</compile_context>

<pallas_src>
import functools

import jax
import jax.numpy as jnp
from jax.experimental import pallas as pl
from jax.experimental.pallas import tpu as pltpu

EPS = 1e-5


# ----------------------------------------------------------------------------
# Kernel A: depthwise 2x2/stride-2 conv on an H-tile + per-channel sum/sumsq
# ----------------------------------------------------------------------------
def _conv_stats_kernel(x_ref, w_ref, de_ref, do_ref, y_ref, s_ref, *, rows):
    # x_ref : (1, C, 2*rows, W)  -- 2*rows input image rows (contiguous)
    # w_ref : (C, 5) f32         -- columns [w00, w01, w10, w11, bias]
    # de_ref: (W, Wo) f32        -- De[m, j] = 1 if m == 2j   (even columns)
    # do_ref: (W, Wo) f32        -- Do[m, j] = 1 if m == 2j+1 (odd columns)
    # y_ref : (1, C, rows*Wo)    -- lane-dense conv output tile
    # s_ref : (1, C, 2) f32      -- resident per-channel [sum, sum_sq] accumulator
    w00 = w_ref[:, 0:1]
    w01 = w_ref[:, 1:2]
    w10 = w_ref[:, 2:3]
    w11 = w_ref[:, 3:4]
    bias = w_ref[:, 4:5]
    de = de_ref[...]
    do = do_ref[...]

    parts = []
    for r in range(rows):                                   # static unroll
        top = x_ref[0, :, 2 * r, :].astype(jnp.float32)     # (C, W)
        bot = x_ref[0, :, 2 * r + 1, :].astype(jnp.float32)
        u = top * w00 + bot * w10                           # left-column combine
        v = top * w01 + bot * w11                           # right-column combine
        y_r = (jnp.dot(u, de, preferred_element_type=jnp.float32)
               + jnp.dot(v, do, preferred_element_type=jnp.float32)
               + bias)                                      # (C, Wo)
        parts.append(y_r)

    y = parts[0] if rows == 1 else jnp.concatenate(parts, axis=-1)  # (C, rows*Wo)
    y_ref[0] = y.astype(y_ref.dtype)                        # one lane-dense store

    @pl.when(pl.program_id(1) == 0)
    def _():
        s_ref[...] = jnp.zeros_like(s_ref)

    s_ref[0, :, 0:1] += jnp.sum(y, axis=-1, keepdims=True)
    s_ref[0, :, 1:2] += jnp.sum(y * y, axis=-1, keepdims=True)


# ----------------------------------------------------------------------------
# Kernel B: apply folded GroupNorm (y * scale[c] + shift[c]) per sample
# ----------------------------------------------------------------------------
def _norm_kernel(y_ref, ss_ref, o_ref):
    # y_ref : (1, C, S) conv output tile;  ss_ref: (1, C, 2) f32 [scale, shift]
    scale = ss_ref[0, :, 0:1]
    shift = ss_ref[0, :, 1:2]
    o_ref[...] = (y_ref[...].astype(jnp.float32) * scale + shift).astype(o_ref.dtype)


# ----------------------------------------------------------------------------
# Tiling helper: output rows per tile
# ----------------------------------------------------------------------------
def _choose_rows(ho, wo, c, w, itemsize, budget_bytes=4 << 20, max_rows=32):
    """Pick R output rows per tile such that:
         * R divides Ho
         * output lane width R*Wo is a multiple of 128 (or the full sample)
         * input block sublane dim 2R is a multiple of 8 (or the full H)
         * input tile C * 2R * W stays under the byte budget."""
    for r in range(min(ho, max_rows), 0, -1):
        if ho % r:
            continue
        lane_ok = ((r * wo) % 128 == 0) or (r == ho)
        sub_ok = ((2 * r) % 8 == 0) or (r == ho)
        if not (lane_ok and sub_ok):
            continue
        if c * (2 * r) * w * itemsize <= budget_bytes:
            return r
    # Fallback: whole sample per tile (full-extent blocks are always legal).
    return ho


# ----------------------------------------------------------------------------
# Wrapper
# ----------------------------------------------------------------------------
@functools.partial(jax.jit, static_argnames=("max_rows",))
def down_block(x, conv_w, conv_b, gn_gamma, gn_beta, max_rows=32):
    """x: (N, C, H, W); conv_w: (C, 1, 2, 2) torch depthwise layout;
    conv_b / gn_gamma / gn_beta: (C,). Returns (N, C, H//2, W//2) in x.dtype."""
    N, C, H, W = x.shape
    assert H % 2 == 0 and W % 2 == 0, "DownBlock kernel requires even H and W"
    Ho, Wo = H // 2, W // 2
    SF = Ho * Wo
    itemsize = x.dtype.itemsize

    R = _choose_rows(Ho, Wo, C, W, itemsize, max_rows=max_rows)
    T = Ho // R
    S = R * Wo                       # output lanes per tile

    # Packed per-channel conv weights [w00, w01, w10, w11, bias], f32.
    wp = jnp.stack(
        [conv_w[:, 0, 0, 0], conv_w[:, 0, 0, 1],
         conv_w[:, 0, 1, 0], conv_w[:, 0, 1, 1], conv_b],
        axis=-1).astype(jnp.float32)                               # (C, 5)

    # Channel-independent even/odd column selection matrices (MXU de-interleave).
    m = jnp.arange(W, dtype=jnp.int32)[:, None]
    j = jnp.arange(Wo, dtype=jnp.int32)[None, :]
    de = (m == 2 * j).astype(jnp.float32)                          # (W, Wo)
    do = (m == 2 * j + 1).astype(jnp.float32)                      # (W, Wo)

    flops_a = int(N * C * Ho * (6 * W + 4 * W * Wo + 2 * Wo))
    bytes_a = int(N * C * (H * W + SF) * itemsize
                  + N * C * 2 * 4 + 2 * W * Wo * 4 + C * 5 * 4)

    y, csums = pl.pallas_call(
        functools.partial(_conv_stats_kernel, rows=R),
        grid=(N, T),
        in_specs=[
            pl.BlockSpec((1, C, 2 * R, W), lambda n, t: (n, 0, t, 0)),
            pl.BlockSpec((C, 5), lambda n, t: (0, 0)),
            pl.BlockSpec((W, Wo), lambda n, t: (0, 0)),
            pl.BlockSpec((W, Wo), lambda n, t: (0, 0)),
        ],
        out_specs=[
            pl.BlockSpec((1, C, S), lambda n, t: (n, 0, t)),
            pl.BlockSpec((1, C, 2), lambda n, t: (n, 0, 0)),
        ],
        out_shape=[
            jax.ShapeDtypeStruct((N, C, SF), x.dtype),             # conv output
            jax.ShapeDtypeStruct((N, C, 2), jnp.float32),          # [sum, sumsq]
        ],
        compiler_params=pltpu.CompilerParams(
            dimension_semantics=("parallel", "arbitrary")),
        cost_estimate=pl.CostEstimate(
            flops=flops_a, transcendentals=0, bytes_accessed=bytes_a),
    )(x, wp, de, do)

    # GroupNorm(num_groups=1) statistics (tiny, done in XLA): one-pass variance.
    cnt = jnp.float32(C * SF)
    total = jnp.sum(csums[:, :, 0], axis=-1)                       # (N,)
    total_sq = jnp.sum(csums[:, :, 1], axis=-1)
    mean = total / cnt
    var = jnp.maximum(total_sq / cnt - mean * mean, 0.0)
    rstd = jax.lax.rsqrt(var + EPS)
    scale = rstd[:, None] * gn_gamma[None, :].astype(jnp.float32)  # (N, C)
    shift = gn_beta[None, :].astype(jnp.float32) - mean[:, None] * scale
    ss = jnp.stack([scale, shift], axis=-1)                        # (N, C, 2)

    flops_b = int(2 * N * C * SF)
    bytes_b = int(2 * N * C * SF * itemsize + N * C * 2 * 4)

    out_flat = pl.pallas_call(
        _norm_kernel,
        grid=(N, T),
        in_specs=[
            pl.BlockSpec((1, C, S), lambda n, t: (n, 0, t)),
            pl.BlockSpec((1, C, 2), lambda n, t: (n, 0, 0)),
        ],
        out_specs=pl.BlockSpec((1, C, S), lambda n, t: (n, 0, t)),
        out_shape=jax.ShapeDtypeStruct((N, C, SF), x.dtype),
        compiler_params=pltpu.CompilerParams(
            dimension_semantics=("parallel", "parallel")),
        cost_estimate=pl.CostEstimate(
            flops=flops_b, transcendentals=0, bytes_accessed=bytes_b),
    )(y, ss)

    return out_flat.reshape(N, C, Ho, Wo)                          # free view


# ----------------------------------------------------------------------------
# Pure-JAX reference (NCHW) for correctness checking
# ----------------------------------------------------------------------------
def down_block_ref(x, conv_w, conv_b, gn_gamma, gn_beta):
    x = x.astype(jnp.float32)
    w = conv_w[:, 0].astype(jnp.float32)                           # (C, 2, 2)
    y = (x[:, :, 0::2, 0::2] * w[:, 0, 0][None, :, None, None]
         + x[:, :, 0::2, 1::2] * w[:, 0, 1][None, :, None, None]
         + x[:, :, 1::2, 0::2] * w[:, 1, 0][None, :, None, None]
         + x[:, :, 1::2, 1::2] * w[:, 1, 1][None, :, None, None]
         + conv_b[None, :, None, None])
    mean = jnp.mean(y, axis=(1, 2, 3), keepdims=True)
    var = jnp.mean((y - mean) ** 2, axis=(1, 2, 3), keepdims=True)
    xhat = (y - mean) * jax.lax.rsqrt(var + EPS)
    return xhat * gn_gamma[None, :, None, None] + gn_beta[None, :, None, None]


if __name__ == "__main__":
    key = jax.random.PRNGKey(0)
    kx, kw, kb, kg, kbe = jax.random.split(key, 5)

    # Test 1: small shape, single tile per sample.
    N, C, H, W = 2, 4, 16, 16
    x = jax.random.normal(kx, (N, C, H, W), dtype=jnp.float32)
    conv_w = jax.random.normal(kw, (C, 1, 2, 2), dtype=jnp.float32) * 0.5
    conv_b = jax.random.normal(kb, (C,), dtype=jnp.float32) * 0.1
    gn_gamma = 1.0 + 0.1 * jax.random.normal(kg, (C,), dtype=jnp.float32)
    gn_beta = 0.1 * jax.random.normal(kbe, (C,), dtype=jnp.float32)

    out = jax.block_until_ready(down_block(x, conv_w, conv_b, gn_gamma, gn_beta))
    ref = down_block_ref(x, conv_w, conv_b, gn_gamma, gn_beta)
    assert out.shape == (N, C, H // 2, W // 2)
    assert jnp.allclose(out, ref, atol=1e-3, rtol=1e-3), "mismatch vs reference (single tile)"

    # Test 2: larger shape forcing the multi-tile (accumulated stats) path.
    C2 = 8
    x2 = jax.random.normal(kx, (2, C2, 64, 64), dtype=jnp.float32)
    conv_w2 = jax.random.normal(kw, (C2, 1, 2, 2), dtype=jnp.float32) * 0.5
    conv_b2 = jax.random.normal(kb, (C2,), dtype=jnp.float32) * 0.1
    gn_gamma2 = 1.0 + 0.1 * jax.random.normal(kg, (C2,), dtype=jnp.float32)
    gn_beta2 = 0.1 * jax.random.normal(kbe, (C2,), dtype=jnp.float32)

    out2 = jax.block_until_ready(
        down_block(x2, conv_w2, conv_b2, gn_gamma2, gn_beta2, max_rows=8))
    ref2 = down_block_ref(x2, conv_w2, conv_b2, gn_gamma2, gn_beta2)
    assert out2.shape == (2, C2, 32, 32)
    assert jnp.allclose(out2, ref2, atol=1e-3, rtol=1e-3), "mismatch vs reference (tiled)"

    print("KERNEL_OK")
</pallas_src>

<mosaic_0001>
module attributes {stable_mosaic.version = 11 : i64} {
  func.func @_conv_stats_kernel(%arg0: i32, %arg1: i32, %arg2: memref<1x4x16x16xf32, #tpu.memory_space<vmem>>, %arg3: memref<4x5xf32, #tpu.memory_space<vmem>>, %arg4: memref<16x8xf32, #tpu.memory_space<vmem>>, %arg5: memref<16x8xf32, #tpu.memory_space<vmem>>, %arg6: memref<1x4x64xf32, #tpu.memory_space<vmem>>, %arg7: memref<1x4x2xf32, #tpu.memory_space<vmem>>) attributes {dimension_semantics = [#tpu.dimension_semantics<parallel>, #tpu.dimension_semantics<arbitrary>], iteration_bounds = array<i64: 2, 1>, scalar_prefetch = 0 : i64, scratch_operands = 0 : i64, tpu.core_type = #tpu.core_type<tc>, window_params = [{transform_indices = @transform_0, window_bounds = array<i64: 1, 4, 16, 16>}, {pipeline_mode = #tpu.pipeline_mode<synchronous>, transform_indices = @transform_1, window_bounds = array<i64: 4, 5>}, {pipeline_mode = #tpu.pipeline_mode<synchronous>, transform_indices = @transform_2, window_bounds = array<i64: 16, 8>}, {pipeline_mode = #tpu.pipeline_mode<synchronous>, transform_indices = @transform_3, window_bounds = array<i64: 16, 8>}, {transform_indices = @transform_4, window_bounds = array<i64: 1, 4, 64>}, {transform_indices = @transform_5, window_bounds = array<i64: 1, 4, 2>}]} {
    %c0 = arith.constant 0 : index
    %c0_0 = arith.constant 0 : index
    %0 = vector.load %arg3[%c0, %c0_0] : memref<4x5xf32, #tpu.memory_space<vmem>>, vector<4x1xf32>
    %c0_1 = arith.constant 0 : index
    %c1 = arith.constant 1 : index
    %1 = vector.load %arg3[%c0_1, %c1] : memref<4x5xf32, #tpu.memory_space<vmem>>, vector<4x1xf32>
    %c0_2 = arith.constant 0 : index
    %c2 = arith.constant 2 : index
    %2 = vector.load %arg3[%c0_2, %c2] : memref<4x5xf32, #tpu.memory_space<vmem>>, vector<4x1xf32>
    %c0_3 = arith.constant 0 : index
    %c3 = arith.constant 3 : index
    %3 = vector.load %arg3[%c0_3, %c3] : memref<4x5xf32, #tpu.memory_space<vmem>>, vector<4x1xf32>
    %c0_4 = arith.constant 0 : index
    %c4 = arith.constant 4 : index
    %4 = vector.load %arg3[%c0_4, %c4] : memref<4x5xf32, #tpu.memory_space<vmem>>, vector<4x1xf32>
    %c0_5 = arith.constant 0 : index
    %c0_6 = arith.constant 0 : index
    %5 = vector.load %arg4[%c0_5, %c0_6] : memref<16x8xf32, #tpu.memory_space<vmem>>, vector<16x8xf32>
    %c0_7 = arith.constant 0 : index
    %c0_8 = arith.constant 0 : index
    %6 = vector.load %arg5[%c0_7, %c0_8] : memref<16x8xf32, #tpu.memory_space<vmem>>, vector<16x8xf32>
    %c0_9 = arith.constant 0 : index
    %c0_10 = arith.constant 0 : index
    %c0_11 = arith.constant 0 : index
    %c0_12 = arith.constant 0 : index
    %7 = vector.load %arg2[%c0_9, %c0_10, %c0_11, %c0_12] : memref<1x4x16x16xf32, #tpu.memory_space<vmem>>, vector<1x4x1x16xf32>
    %8 = vector.shape_cast %7 : vector<1x4x1x16xf32> to vector<4x16xf32>
    %c0_13 = arith.constant 0 : index
    %c0_14 = arith.constant 0 : index
    %c1_15 = arith.constant 1 : index
    %c0_16 = arith.constant 0 : index
    %9 = vector.load %arg2[%c0_13, %c0_14, %c1_15, %c0_16] : memref<1x4x16x16xf32, #tpu.memory_space<vmem>>, vector<1x4x1x16xf32>
    %10 = vector.shape_cast %9 : vector<1x4x1x16xf32> to vector<4x16xf32>
    %11 = vector.broadcast %0 : vector<4x1xf32> to vector<4x16xf32>
    %12 = arith.mulf %8, %11 : vector<4x16xf32>
    %13 = vector.broadcast %2 : vector<4x1xf32> to vector<4x16xf32>
    %14 = arith.mulf %10, %13 : vector<4x16xf32>
    %15 = arith.addf %12, %14 : vector<4x16xf32>
    %16 = vector.broadcast %1 : vector<4x1xf32> to vector<4x16xf32>
    %17 = arith.mulf %8, %16 : vector<4x16xf32>
    %18 = vector.broadcast %3 : vector<4x1xf32> to vector<4x16xf32>
    %19 = arith.mulf %10, %18 : vector<4x16xf32>
    %20 = arith.addf %17, %19 : vector<4x16xf32>
    %cst = arith.constant dense<0.000000e+00> : vector<4x8xf32>
    %21 = tpu.matmul %15, %5, %cst {dimension_numbers = #tpu.dot_dimension_numbers<[1], [0], [0], [1], [0, 0, 1, 1], [], []>} : vector<4x16xf32>, vector<16x8xf32>, vector<4x8xf32> -> vector<4x8xf32>
    %cst_17 = arith.constant dense<0.000000e+00> : vector<4x8xf32>
    %22 = tpu.matmul %20, %6, %cst_17 {dimension_numbers = #tpu.dot_dimension_numbers<[1], [0], [0], [1], [0, 0, 1, 1], [], []>} : vector<4x16xf32>, vector<16x8xf32>, vector<4x8xf32> -> vector<4x8xf32>
    %23 = arith.addf %21, %22 : vector<4x8xf32>
    %24 = vector.broadcast %4 : vector<4x1xf32> to vector<4x8xf32>
    %25 = arith.addf %23, %24 : vector<4x8xf32>
    %c0_18 = arith.constant 0 : index
    %c0_19 = arith.constant 0 : index
    %c2_20 = arith.constant 2 : index
    %c0_21 = arith.constant 0 : index
    %26 = vector.load %arg2[%c0_18, %c0_19, %c2_20, %c0_21] : memref<1x4x16x16xf32, #tpu.memory_space<vmem>>, vector<1x4x1x16xf32>
    %27 = vector.shape_cast %26 : vector<1x4x1x16xf32> to vector<4x16xf32>
    %c0_22 = arith.constant 0 : index
    %c0_23 = arith.constant 0 : index
    %c3_24 = arith.constant 3 : index
    %c0_25 = arith.constant 0 : index
    %28 = vector.load %arg2[%c0_22, %c0_23, %c3_24, %c0_25] : memref<1x4x16x16xf32, #tpu.memory_space<vmem>>, vector<1x4x1x16xf32>
    %29 = vector.shape_cast %28 : vector<1x4x1x16xf32> to vector<4x16xf32>
    %30 = vector.broadcast %0 : vector<4x1xf32> to vector<4x16xf32>
    %31 = arith.mulf %27, %30 : vector<4x16xf32>
    %32 = vector.broadcast %2 : vector<4x1xf32> to vector<4x16xf32>
    %33 = arith.mulf %29, %32 : vector<4x16xf32>
    %34 = arith.addf %31, %33 : vector<4x16xf32>
    %35 = vector.broadcast %1 : vector<4x1xf32> to vector<4x16xf32>
    %36 = arith.mulf %27, %35 : vector<4x16xf32>
    %37 = vector.broadcast %3 : vector<4x1xf32> to vector<4x16xf32>
    %38 = arith.mulf %29, %37 : vector<4x16xf32>
    %39 = arith.addf %36, %38 : vector<4x16xf32>
    %cst_26 = arith.constant dense<0.000000e+00> : vector<4x8xf32>
    %40 = tpu.matmul %34, %5, %cst_26 {dimension_numbers = #tpu.dot_dimension_numbers<[1], [0], [0], [1], [0, 0, 1, 1], [], []>} : vector<4x16xf32>, vector<16x8xf32>, vector<4x8xf32> -> vector<4x8xf32>
    %cst_27 = arith.constant dense<0.000000e+00> : vector<4x8xf32>
    %41 = tpu.matmul %39, %6, %cst_27 {dimension_numbers = #tpu.dot_dimension_numbers<[1], [0], [0], [1], [0, 0, 1, 1], [], []>} : vector<4x16xf32>, vector<16x8xf32>, vector<4x8xf32> -> vector<4x8xf32>
    %42 = arith.addf %40, %41 : vector<4x8xf32>
    %43 = vector.broadcast %4 : vector<4x1xf32> to vector<4x8xf32>
    %44 = arith.addf %42, %43 : vector<4x8xf32>
    %c0_28 = arith.constant 0 : index
    %c0_29 = arith.constant 0 : index
    %c4_30 = arith.constant 4 : index
    %c0_31 = arith.constant 0 : index
    %45 = vector.load %arg2[%c0_28, %c0_29, %c4_30, %c0_31] : memref<1x4x16x16xf32, #tpu.memory_space<vmem>>, vector<1x4x1x16xf32>
    %46 = vector.shape_cast %45 : vector<1x4x1x16xf32> to vector<4x16xf32>
    %c0_32 = arith.constant 0 : index
    %c0_33 = arith.constant 0 : index
    %c5 = arith.constant 5 : index
    %c0_34 = arith.constant 0 : index
    %47 = vector.load %arg2[%c0_32, %c0_33, %c5, %c0_34] : memref<1x4x16x16xf32, #tpu.memory_space<vmem>>, vector<1x4x1x16xf32>
    %48 = vector.shape_cast %47 : vector<1x4x1x16xf32> to vector<4x16xf32>
    %49 = vector.broadcast %0 : vector<4x1xf32> to vector<4x16xf32>
    %50 = arith.mulf %46, %49 : vector<4x16xf32>
    %51 = vector.broadcast %2 : vector<4x1xf32> to vector<4x16xf32>
    %52 = arith.mulf %48, %51 : vector<4x16xf32>
    %53 = arith.addf %50, %52 : vector<4x16xf32>
    %54 = vector.broadcast %1 : vector<4x1xf32> to vector<4x16xf32>
    %55 = arith.mulf %46, %54 : vector<4x16xf32>
    %56 = vector.broadcast %3 : vector<4x1xf32> to vector<4x16xf32>
    %57 = arith.mulf %48, %56 : vector<4x16xf32>
    %58 = arith.addf %55, %57 : vector<4x16xf32>
    %cst_35 = arith.constant dense<0.000000e+00> : vector<4x8xf32>
    %59 = tpu.matmul %53, %5, %cst_35 {dimension_numbers = #tpu.dot_dimension_numbers<[1], [0], [0], [1], [0, 0, 1, 1], [], []>} : vector<4x16xf32>, vector<16x8xf32>, vector<4x8xf32> -> vector<4x8xf32>
    %cst_36 = arith.constant dense<0.000000e+00> : vector<4x8xf32>
    %60 = tpu.matmul %58, %6, %cst_36 {dimension_numbers = #tpu.dot_dimension_numbers<[1], [0], [0], [1], [0, 0, 1, 1], [], []>} : vector<4x16xf32>, vector<16x8xf32>, vector<4x8xf32> -> vector<4x8xf32>
    %61 = arith.addf %59, %60 : vector<4x8xf32>
    %62 = vector.broadcast %4 : vector<4x1xf32> to vector<4x8xf32>
    %63 = arith.addf %61, %62 : vector<4x8xf32>
    %c0_37 = arith.constant 0 : index
    %c0_38 = arith.constant 0 : index
    %c6 = arith.constant 6 : index
    %c0_39 = arith.constant 0 : index
    %64 = vector.load %arg2[%c0_37, %c0_38, %c6, %c0_39] : memref<1x4x16x16xf32, #tpu.memory_space<vmem>>, vector<1x4x1x16xf32>
    %65 = vector.shape_cast %64 : vector<1x4x1x16xf32> to vector<4x16xf32>
    %c0_40 = arith.constant 0 : index
    %c0_41 = arith.constant 0 : index
    %c7 = arith.constant 7 : index
    %c0_42 = arith.constant 0 : index
    %66 = vector.load %arg2[%c0_40, %c0_41, %c7, %c0_42] : memref<1x4x16x16xf32, #tpu.memory_space<vmem>>, vector<1x4x1x16xf32>
    %67 = vector.shape_cast %66 : vector<1x4x1x16xf32> to vector<4x16xf32>
    %68 = vector.broadcast %0 : vector<4x1xf32> to vector<4x16xf32>
    %69 = arith.mulf %65, %68 : vector<4x16xf32>
    %70 = vector.broadcast %2 : vector<4x1xf32> to vector<4x16xf32>
    %71 = arith.mulf %67, %70 : vector<4x16xf32>
    %72 = arith.addf %69, %71 : vector<4x16xf32>
    %73 = vector.broadcast %1 : vector<4x1xf32> to vector<4x16xf32>
    %74 = arith.mulf %65, %73 : vector<4x16xf32>
    %75 = vector.broadcast %3 : vector<4x1xf32> to vector<4x16xf32>
    %76 = arith.mulf %67, %75 : vector<4x16xf32>
    %77 = arith.addf %74, %76 : vector<4x16xf32>
    %cst_43 = arith.constant dense<0.000000e+00> : vector<4x8xf32>
    %78 = tpu.matmul %72, %5, %cst_43 {dimension_numbers = #tpu.dot_dimension_numbers<[1], [0], [0], [1], [0, 0, 1, 1], [], []>} : vector<4x16xf32>, vector<16x8xf32>, vector<4x8xf32> -> vector<4x8xf32>
    %cst_44 = arith.constant dense<0.000000e+00> : vector<4x8xf32>
    %79 = tpu.matmul %77, %6, %cst_44 {dimension_numbers = #tpu.dot_dimension_numbers<[1], [0], [0], [1], [0, 0, 1, 1], [], []>} : vector<4x16xf32>, vector<16x8xf32>, vector<4x8xf32> -> vector<4x8xf32>
    %80 = arith.addf %78, %79 : vector<4x8xf32>
    %81 = vector.broadcast %4 : vector<4x1xf32> to vector<4x8xf32>
    %82 = arith.addf %80, %81 : vector<4x8xf32>
    %c0_45 = arith.constant 0 : index
    %c0_46 = arith.constant 0 : index
    %c8 = arith.constant 8 : index
    %c0_47 = arith.constant 0 : index
    %83 = vector.load %arg2[%c0_45, %c0_46, %c8, %c0_47] : memref<1x4x16x16xf32, #tpu.memory_space<vmem>>, vector<1x4x1x16xf32>
    %84 = vector.shape_cast %83 : vector<1x4x1x16xf32> to vector<4x16xf32>
    %c0_48 = arith.constant 0 : index
    %c0_49 = arith.constant 0 : index
    %c9 = arith.constant 9 : index
    %c0_50 = arith.constant 0 : index
    %85 = vector.load %arg2[%c0_48, %c0_49, %c9, %c0_50] : memref<1x4x16x16xf32, #tpu.memory_space<vmem>>, vector<1x4x1x16xf32>
    %86 = vector.shape_cast %85 : vector<1x4x1x16xf32> to vector<4x16xf32>
    %87 = vector.broadcast %0 : vector<4x1xf32> to vector<4x16xf32>
    %88 = arith.mulf %84, %87 : vector<4x16xf32>
    %89 = vector.broadcast %2 : vector<4x1xf32> to vector<4x16xf32>
    %90 = arith.mulf %86, %89 : vector<4x16xf32>
    %91 = arith.addf %88, %90 : vector<4x16xf32>
    %92 = vector.broadcast %1 : vector<4x1xf32> to vector<4x16xf32>
    %93 = arith.mulf %84, %92 : vector<4x16xf32>
    %94 = vector.broadcast %3 : vector<4x1xf32> to vector<4x16xf32>
    %95 = arith.mulf %86, %94 : vector<4x16xf32>
    %96 = arith.addf %93, %95 : vector<4x16xf32>
    %cst_51 = arith.constant dense<0.000000e+00> : vector<4x8xf32>
    %97 = tpu.matmul %91, %5, %cst_51 {dimension_numbers = #tpu.dot_dimension_numbers<[1], [0], [0], [1], [0, 0, 1, 1], [], []>} : vector<4x16xf32>, vector<16x8xf32>, vector<4x8xf32> -> vector<4x8xf32>
    %cst_52 = arith.constant dense<0.000000e+00> : vector<4x8xf32>
    %98 = tpu.matmul %96, %6, %cst_52 {dimension_numbers = #tpu.dot_dimension_numbers<[1], [0], [0], [1], [0, 0, 1, 1], [], []>} : vector<4x16xf32>, vector<16x8xf32>, vector<4x8xf32> -> vector<4x8xf32>
    %99 = arith.addf %97, %98 : vector<4x8xf32>
    %100 = vector.broadcast %4 : vector<4x1xf32> to vector<4x8xf32>
    %101 = arith.addf %99, %100 : vector<4x8xf32>
    %c0_53 = arith.constant 0 : index
    %c0_54 = arith.constant 0 : index
    %c10 = arith.constant 10 : index
    %c0_55 = arith.constant 0 : index
    %102 = vector.load %arg2[%c0_53, %c0_54, %c10, %c0_55] : memref<1x4x16x16xf32, #tpu.memory_space<vmem>>, vector<1x4x1x16xf32>
    %103 = vector.shape_cast %102 : vector<1x4x1x16xf32> to vector<4x16xf32>
    %c0_56 = arith.constant 0 : index
    %c0_57 = arith.constant 0 : index
    %c11 = arith.constant 11 : index
    %c0_58 = arith.constant 0 : index
    %104 = vector.load %arg2[%c0_56, %c0_57, %c11, %c0_58] : memref<1x4x16x16xf32, #tpu.memory_space<vmem>>, vector<1x4x1x16xf32>
    %105 = vector.shape_cast %104 : vector<1x4x1x16xf32> to vector<4x16xf32>
    %106 = vector.broadcast %0 : vector<4x1xf32> to vector<4x16xf32>
    %107 = arith.mulf %103, %106 : vector<4x16xf32>
    %108 = vector.broadcast %2 : vector<4x1xf32> to vector<4x16xf32>
    %109 = arith.mulf %105, %108 : vector<4x16xf32>
    %110 = arith.addf %107, %109 : vector<4x16xf32>
    %111 = vector.broadcast %1 : vector<4x1xf32> to vector<4x16xf32>
    %112 = arith.mulf %103, %111 : vector<4x16xf32>
    %113 = vector.broadcast %3 : vector<4x1xf32> to vector<4x16xf32>
    %114 = arith.mulf %105, %113 : vector<4x16xf32>
    %115 = arith.addf %112, %114 : vector<4x16xf32>
    %cst_59 = arith.constant dense<0.000000e+00> : vector<4x8xf32>
    %116 = tpu.matmul %110, %5, %cst_59 {dimension_numbers = #tpu.dot_dimension_numbers<[1], [0], [0], [1], [0, 0, 1, 1], [], []>} : vector<4x16xf32>, vector<16x8xf32>, vector<4x8xf32> -> vector<4x8xf32>
    %cst_60 = arith.constant dense<0.000000e+00> : vector<4x8xf32>
    %117 = tpu.matmul %115, %6, %cst_60 {dimension_numbers = #tpu.dot_dimension_numbers<[1], [0], [0], [1], [0, 0, 1, 1], [], []>} : vector<4x16xf32>, vector<16x8xf32>, vector<4x8xf32> -> vector<4x8xf32>
    %118 = arith.addf %116, %117 : vector<4x8xf32>
    %119 = vector.broadcast %4 : vector<4x1xf32> to vector<4x8xf32>
    %120 = arith.addf %118, %119 : vector<4x8xf32>
    %c0_61 = arith.constant 0 : index
    %c0_62 = arith.constant 0 : index
    %c12 = arith.constant 12 : index
    %c0_63 = arith.constant 0 : index
    %121 = vector.load %arg2[%c0_61, %c0_62, %c12, %c0_63] : memref<1x4x16x16xf32, #tpu.memory_space<vmem>>, vector<1x4x1x16xf32>
    %122 = vector.shape_cast %121 : vector<1x4x1x16xf32> to vector<4x16xf32>
    %c0_64 = arith.constant 0 : index
    %c0_65 = arith.constant 0 : index
    %c13 = arith.constant 13 : index
    %c0_66 = arith.constant 0 : index
    %123 = vector.load %arg2[%c0_64, %c0_65, %c13, %c0_66] : memref<1x4x16x16xf32, #tpu.memory_space<vmem>>, vector<1x4x1x16xf32>
    %124 = vector.shape_cast %123 : vector<1x4x1x16xf32> to vector<4x16xf32>
    %125 = vector.broadcast %0 : vector<4x1xf32> to vector<4x16xf32>
    %126 = arith.mulf %122, %125 : vector<4x16xf32>
    %127 = vector.broadcast %2 : vector<4x1xf32> to vector<4x16xf32>
    %128 = arith.mulf %124, %127 : vector<4x16xf32>
    %129 = arith.addf %126, %128 : vector<4x16xf32>
    %130 = vector.broadcast %1 : vector<4x1xf32> to vector<4x16xf32>
    %131 = arith.mulf %122, %130 : vector<4x16xf32>
    %132 = vector.broadcast %3 : vector<4x1xf32> to vector<4x16xf32>
    %133 = arith.mulf %124, %132 : vector<4x16xf32>
    %134 = arith.addf %131, %133 : vector<4x16xf32>
    %cst_67 = arith.constant dense<0.000000e+00> : vector<4x8xf32>
    %135 = tpu.matmul %129, %5, %cst_67 {dimension_numbers = #tpu.dot_dimension_numbers<[1], [0], [0], [1], [0, 0, 1, 1], [], []>} : vector<4x16xf32>, vector<16x8xf32>, vector<4x8xf32> -> vector<4x8xf32>
    %cst_68 = arith.constant dense<0.000000e+00> : vector<4x8xf32>
    %136 = tpu.matmul %134, %6, %cst_68 {dimension_numbers = #tpu.dot_dimension_numbers<[1], [0], [0], [1], [0, 0, 1, 1], [], []>} : vector<4x16xf32>, vector<16x8xf32>, vector<4x8xf32> -> vector<4x8xf32>
    %137 = arith.addf %135, %136 : vector<4x8xf32>
    %138 = vector.broadcast %4 : vector<4x1xf32> to vector<4x8xf32>
    %139 = arith.addf %137, %138 : vector<4x8xf32>
    %c0_69 = arith.constant 0 : index
    %c0_70 = arith.constant 0 : index
    %c14 = arith.constant 14 : index
    %c0_71 = arith.constant 0 : index
    %140 = vector.load %arg2[%c0_69, %c0_70, %c14, %c0_71] : memref<1x4x16x16xf32, #tpu.memory_space<vmem>>, vector<1x4x1x16xf32>
    %141 = vector.shape_cast %140 : vector<1x4x1x16xf32> to vector<4x16xf32>
    %c0_72 = arith.constant 0 : index
    %c0_73 = arith.constant 0 : index
    %c15 = arith.constant 15 : index
    %c0_74 = arith.constant 0 : index
    %142 = vector.load %arg2[%c0_72, %c0_73, %c15, %c0_74] : memref<1x4x16x16xf32, #tpu.memory_space<vmem>>, vector<1x4x1x16xf32>
    %143 = vector.shape_cast %142 : vector<1x4x1x16xf32> to vector<4x16xf32>
    %144 = vector.broadcast %0 : vector<4x1xf32> to vector<4x16xf32>
    %145 = arith.mulf %141, %144 : vector<4x16xf32>
    %146 = vector.broadcast %2 : vector<4x1xf32> to vector<4x16xf32>
    %147 = arith.mulf %143, %146 : vector<4x16xf32>
    %148 = arith.addf %145, %147 : vector<4x16xf32>
    %149 = vector.broadcast %1 : vector<4x1xf32> to vector<4x16xf32>
    %150 = arith.mulf %141, %149 : vector<4x16xf32>
    %151 = vector.broadcast %3 : vector<4x1xf32> to vector<4x16xf32>
    %152 = arith.mulf %143, %151 : vector<4x16xf32>
    %153 = arith.addf %150, %152 : vector<4x16xf32>
    %cst_75 = arith.constant dense<0.000000e+00> : vector<4x8xf32>
    %154 = tpu.matmul %148, %5, %cst_75 {dimension_numbers = #tpu.dot_dimension_numbers<[1], [0], [0], [1], [0, 0, 1, 1], [], []>} : vector<4x16xf32>, vector<16x8xf32>, vector<4x8xf32> -> vector<4x8xf32>
    %cst_76 = arith.constant dense<0.000000e+00> : vector<4x8xf32>
    %155 = tpu.matmul %153, %6, %cst_76 {dimension_numbers = #tpu.dot_dimension_numbers<[1], [0], [0], [1], [0, 0, 1, 1], [], []>} : vector<4x16xf32>, vector<16x8xf32>, vector<4x8xf32> -> vector<4x8xf32>
    %156 = arith.addf %154, %155 : vector<4x8xf32>
    %157 = vector.broadcast %4 : vector<4x1xf32> to vector<4x8xf32>
    %158 = arith.addf %156, %157 : vector<4x8xf32>
    %159 = tpu.concatenate %25, %44, %63, %82, %101, %120, %139, %158 in 1 : vector<4x8xf32>, vector<4x8xf32>, vector<4x8xf32>, vector<4x8xf32>, vector<4x8xf32>, vector<4x8xf32>, vector<4x8xf32>, vector<4x8xf32> -> vector<4x64xf32>
    %c0_77 = arith.constant 0 : index
    %c0_78 = arith.constant 0 : index
    %c0_79 = arith.constant 0 : index
    %160 = vector.load %arg6[%c0_77, %c0_78, %c0_79] : memref<1x4x64xf32, #tpu.memory_space<vmem>>, vector<1x4x64xf32>
    %161 = vector.shape_cast %160 : vector<1x4x64xf32> to vector<4x64xf32>
    %162 = vector.shape_cast %159 : vector<4x64xf32> to vector<1x4x64xf32>
    tpu.vector_store %arg6[%c0_77, %c0_78, %c0_79], %162 {strides = array<i32>} : memref<1x4x64xf32, #tpu.memory_space<vmem>>, vector<1x4x64xf32>,
    %c0_i32 = arith.constant 0 : i32
    %163 = arith.cmpi eq, %arg1, %c0_i32 : i32
    %164 = arith.extui %163 : i1 to i32
    %c0_i32_80 = arith.constant 0 : i32
    %165 = arith.cmpi ne, %164, %c0_i32_80 : i32
    scf.if %165 {
      %cst_95 = arith.constant 0.000000e+00 : f32
      %183 = vector.broadcast %cst_95 : f32 to vector<1x4x2xf32>
      %c0_96 = arith.constant 0 : index
      %c0_97 = arith.constant 0 : index
      %c0_98 = arith.constant 0 : index
      %184 = vector.load %arg7[%c0_96, %c0_97, %c0_98] : memref<1x4x2xf32, #tpu.memory_space<vmem>>, vector<1x4x2xf32>
      tpu.vector_store %arg7[%c0_96, %c0_97, %c0_98], %183 {strides = array<i32>} : memref<1x4x2xf32, #tpu.memory_space<vmem>>, vector<1x4x2xf32>,
    } else {
    }
    %c0_81 = arith.constant 0 : index
    %c0_82 = arith.constant 0 : index
    %c0_83 = arith.constant 0 : index
    %166 = vector.load %arg7[%c0_81, %c0_82, %c0_83] : memref<1x4x2xf32, #tpu.memory_space<vmem>>, vector<1x4x1xf32>
    %167 = vector.shape_cast %166 : vector<1x4x1xf32> to vector<4x1xf32>
    %cst_84 = arith.constant dense<0.000000e+00> : vector<4xf32>
    %168 = vector.multi_reduction <add>, %159, %cst_84 [1] : vector<4x64xf32> to vector<4xf32>
    %169 = vector.shape_cast %168 : vector<4xf32> to vector<4x1xf32>
    %170 = arith.addf %167, %169 : vector<4x1xf32>
    %c0_85 = arith.constant 0 : index
    %c0_86 = arith.constant 0 : index
    %c0_87 = arith.constant 0 : index
    %171 = vector.load %arg7[%c0_85, %c0_86, %c0_87] : memref<1x4x2xf32, #tpu.memory_space<vmem>>, vector<1x4x1xf32>
    %172 = vector.shape_cast %171 : vector<1x4x1xf32> to vector<4x1xf32>
    %173 = vector.shape_cast %170 : vector<4x1xf32> to vector<1x4x1xf32>
    tpu.vector_store %arg7[%c0_85, %c0_86, %c0_87], %173 {strides = array<i32>} : memref<1x4x2xf32, #tpu.memory_space<vmem>>, vector<1x4x1xf32>,
    %c0_88 = arith.constant 0 : index
    %c0_89 = arith.constant 0 : index
    %c1_90 = arith.constant 1 : index
    %174 = vector.load %arg7[%c0_88, %c0_89, %c1_90] : memref<1x4x2xf32, #tpu.memory_space<vmem>>, vector<1x4x1xf32>
    %175 = vector.shape_cast %174 : vector<1x4x1xf32> to vector<4x1xf32>
    %176 = arith.mulf %159, %159 : vector<4x64xf32>
    %cst_91 = arith.constant dense<0.000000e+00> : vector<4xf32>
    %177 = vector.multi_reduction <add>, %176, %cst_91 [1] : vector<4x64xf32> to vector<4xf32>
    %178 = vector.shape_cast %177 : vector<4xf32> to vector<4x1xf32>
    %179 = arith.addf %175, %178 : vector<4x1xf32>
    %c0_92 = arith.constant 0 : index
    %c0_93 = arith.constant 0 : index
    %c1_94 = arith.constant 1 : index
    %180 = vector.load %arg7[%c0_92, %c0_93, %c1_94] : memref<1x4x2xf32, #tpu.memory_space<vmem>>, vector<1x4x1xf32>
    %181 = vector.shape_cast %180 : vector<1x4x1xf32> to vector<4x1xf32>
    %182 = vector.shape_cast %179 : vector<4x1xf32> to vector<1x4x1xf32>
    tpu.vector_store %arg7[%c0_92, %c0_93, %c1_94], %182 {strides = array<i32>} : memref<1x4x2xf32, #tpu.memory_space<vmem>>, vector<1x4x1xf32>,
    return
  }
  func.func @transform_0(%arg0: i32, %arg1: i32) -> (i32, i32, i32, i32) {
    %c0_i32 = arith.constant 0 : i32
    %c0_i32_0 = arith.constant 0 : i32
    %c0_i32_1 = arith.constant 0 : i32
    return %arg0, %c0_i32, %arg1, %c0_i32_0 : i32, i32, i32, i32
  }
  func.func @transform_1(%arg0: i32, %arg1: i32) -> (i32, i32) {
    %c0_i32 = arith.constant 0 : i32
    %c0_i32_0 = arith.constant 0 : i32
    %c0_i32_1 = arith.constant 0 : i32
    return %c0_i32, %c0_i32_0 : i32, i32
  }
  func.func @transform_2(%arg0: i32, %arg1: i32) -> (i32, i32) {
    %c0_i32 = arith.constant 0 : i32
    %c0_i32_0 = arith.constant 0 : i32
    %c0_i32_1 = arith.constant 0 : i32
    return %c0_i32, %c0_i32_0 : i32, i32
  }
  func.func @transform_3(%arg0: i32, %arg1: i32) -> (i32, i32) {
    %c0_i32 = arith.constant 0 : i32
    %c0_i32_0 = arith.constant 0 : i32
    %c0_i32_1 = arith.constant 0 : i32
    return %c0_i32, %c0_i32_0 : i32, i32
  }
  func.func @transform_4(%arg0: i32, %arg1: i32) -> (i32, i32, i32) {
    %c0_i32 = arith.constant 0 : i32
    %c0_i32_0 = arith.constant 0 : i32
    return %arg0, %c0_i32, %arg1 : i32, i32, i32
  }
  func.func @transform_5(%arg0: i32, %arg1: i32) -> (i32, i32, i32) {
    %c0_i32 = arith.constant 0 : i32
    %c0_i32_0 = arith.constant 0 : i32
    %c0_i32_1 = arith.constant 0 : i32
    return %arg0, %c0_i32, %c0_i32_0 : i32, i32, i32
  }
}

module attributes {stable_mosaic.version = 11 : i64} {
  func.func @_norm_kernel(%arg0: i32, %arg1: i32, %arg2: memref<1x4x64xf32, #tpu.memory_space<vmem>>, %arg3: memref<1x4x2xf32, #tpu.memory_space<vmem>>, %arg4: memref<1x4x64xf32, #tpu.memory_space<vmem>>) attributes {dimension_semantics = [#tpu.dimension_semantics<parallel>, #tpu.dimension_semantics<parallel>], iteration_bounds = array<i64: 2, 1>, scalar_prefetch = 0 : i64, scratch_operands = 0 : i64, tpu.core_type = #tpu.core_type<tc>, window_params = [{transform_indices = @transform_0, window_bounds = array<i64: 1, 4, 64>}, {transform_indices = @transform_1, window_bounds = array<i64: 1, 4, 2>}, {transform_indices = @transform_2, window_bounds = array<i64: 1, 4, 64>}]} {
    %c0 = arith.constant 0 : index
    %c0_0 = arith.constant 0 : index
    %c0_1 = arith.constant 0 : index
    %0 = vector.load %arg3[%c0, %c0_0, %c0_1] : memref<1x4x2xf32, #tpu.memory_space<vmem>>, vector<1x4x1xf32>
    %1 = vector.shape_cast %0 : vector<1x4x1xf32> to vector<4x1xf32>
    %c0_2 = arith.constant 0 : index
    %c0_3 = arith.constant 0 : index
    %c1 = arith.constant 1 : index
    %2 = vector.load %arg3[%c0_2, %c0_3, %c1] : memref<1x4x2xf32, #tpu.memory_space<vmem>>, vector<1x4x1xf32>
    %3 = vector.shape_cast %2 : vector<1x4x1xf32> to vector<4x1xf32>
    %c0_4 = arith.constant 0 : index
    %c0_5 = arith.constant 0 : index
    %c0_6 = arith.constant 0 : index
    %4 = vector.load %arg2[%c0_4, %c0_5, %c0_6] : memref<1x4x64xf32, #tpu.memory_space<vmem>>, vector<1x4x64xf32>
    %5 = vector.shape_cast %1 : vector<4x1xf32> to vector<1x4x1xf32>
    %6 = vector.broadcast %5 : vector<1x4x1xf32> to vector<1x4x64xf32>
    %7 = arith.mulf %4, %6 : vector<1x4x64xf32>
    %8 = vector.shape_cast %3 : vector<4x1xf32> to vector<1x4x1xf32>
    %9 = vector.broadcast %8 : vector<1x4x1xf32> to vector<1x4x64xf32>
    %10 = arith.addf %7, %9 : vector<1x4x64xf32>
    %c0_7 = arith.constant 0 : index
    %c0_8 = arith.constant 0 : index
    %c0_9 = arith.constant 0 : index
    %11 = vector.load %arg4[%c0_7, %c0_8, %c0_9] : memref<1x4x64xf32, #tpu.memory_space<vmem>>, vector<1x4x64xf32>
    tpu.vector_store %arg4[%c0_7, %c0_8, %c0_9], %10 {strides = array<i32>} : memref<1x4x64xf32, #tpu.memory_space<vmem>>, vector<1x4x64xf32>,
    return
  }
  func.func @transform_0(%arg0: i32, %arg1: i32) -> (i32, i32, i32) {
    %c0_i32 = arith.constant 0 : i32
    %c0_i32_0 = arith.constant 0 : i32
    return %arg0, %c0_i32, %arg1 : i32, i32, i32
  }
  func.func @transform_1(%arg0: i32, %arg1: i32) -> (i32, i32, i32) {
    %c0_i32 = arith.constant 0 : i32
    %c0_i32_0 = arith.constant 0 : i32
    %c0_i32_1 = arith.constant 0 : i32
    return %arg0, %c0_i32, %c0_i32_0 : i32, i32, i32
  }
  func.func @transform_2(%arg0: i32, %arg1: i32) -> (i32, i32, i32) {
    %c0_i32 = arith.constant 0 : i32
    %c0_i32_0 = arith.constant 0 : i32
    return %arg0, %c0_i32, %arg1 : i32, i32, i32
  }
}

</mosaic_0001>

<llo_original>
// kernel: down_block.3
$region0: #{down_block.3}
  #allocation0 [shape = 'u32[]', space=smem, size = 0x4, offset = 0x4, fixed_abs, tag = 'smem constant byte address 0x4 - core index']
  #allocation1 [shape = 'u32[144,128]{1,0:T(1,128)}', space=vmem, size = 0x12000, scoped, tag = 'internal scratch']
  %s0 = inlined_call_operand.vmem [shape: f32[2,4,64], index: 0, kind: input, shape index: {}]
  %s1 = inlined_call_operand.vmem [shape: f32[2,4,2], index: 1, kind: input, shape index: {}]
  %s2 = inlined_call_operand.vmem [shape: f32[2,4,64], index: 2, kind: output, shape index: {}]
  %s3 = sld [smem:[#allocation0]]
  $region41: #{down_block.3} parent=0
    _
  %s5 = ssub.s32 1, %s3
  %s6 = scalar_select 0, %s5, %s3
  loop: start=0, step=1, limit=4
  $region2: #{down_block.3} parent=0 // loop_pre_header
    _
  $region3: #{down_block.3} parent=0 // loop_header
    %s8 = sphi 0, %s12
    %p9 = scmp.ge.s32.totalorder %s8, 4
    %s15 = sphi 0, %s27
    %s16 = sphi 0, %s23
    %s17 = sphi 0, %s15
    %s18 = sphi 0, %s16
    %s19 = sphi 0, %s17
    %s20 = sphi 0, %s18
    %s32 = sphi 0, %s34
    %s35 = sphi 0, %s32
    %s36 = sphi 0, %s35
    %s52 = sphi 0, %s36
    %s58 = sphi 0, %s60
    %s61 = sphi 0, %s58
    %s62 = sphi 0, %s61
    %s78 = sphi 0, %s62
    %s86 = sphi 0, %s88
    %s89 = sphi 0, %s86
    %s90 = sphi 0, %s89
    %s106 = sphi 0, %s90
  $region4: #{down_block.3} parent=0 // loop_header_branch
    %11 = sbr.rel (%p9) target = $region8
  $region5: #{down_block.3} parent=0 // loop_body
    %s13 = ssub.s32 %s8, 1
    %s14 = ssub.s32 %s8, 2
    %s21 = sadd.s32 1, %s16
    %p22 = scmp.ge.s32.totalorder %s21, 1
    %s23 = scalar_select %p22, 0, %s21
    %s24 = sadd.s32 1, %s15
    %s25 = scalar_select %p22, %s24, %s15
    %p26 = scmp.ge.s32.totalorder %s25, 2
    %s27 = scalar_select %p26, 0, %s25
    %s28 = ssub.s32 %s15, %s27
    %s29 = ssub.s32 %s16, %s23
    %s30 = sor.u32 %s28, %s29
    %p31 = scmp.eq.s32.totalorder %s30, 0
    %s33 = sadd.s32 %s32, 1
    %s34 = scalar_select %p31, %s32, %s33
    %p37 = pneg %p31
    %p38 = scmp.eq.s32.totalorder %s8, 1
    %p39 = por %p37, %p38
    %p40 = scmp.ne.s32.totalorder %s32, %s35
    %p41 = scmp.eq.s32.totalorder %s8, 0
    %p42 = por %p40, %p41
    %p43 = scmp.ne.s32.totalorder %s32, %s35
    %p44 = scmp.eq.s32.totalorder %s13, 1
    %p45 = por %p43, %p44
    %p46 = scmp.ne.s32.totalorder %s35, %s36
    %p47 = scmp.eq.s32.totalorder %s13, 0
    %p48 = por %p46, %p47
    %p49 = scmp.ne.s32.totalorder %s35, %s36
    %p50 = scmp.eq.s32.totalorder %s14, 1
    %p51 = por %p49, %p50
    %p53 = scmp.ne.s32.totalorder %s36, %s52
    %p54 = scmp.eq.s32.totalorder %s14, 0
    %p55 = por %p53, %p54
    %s56 = ssub.s32 %s15, %s27
    %p57 = scmp.eq.s32.totalorder %s56, 0
    %s59 = sadd.s32 %s58, 1
    %s60 = scalar_select %p57, %s58, %s59
    %p63 = pneg %p57
    %p64 = scmp.eq.s32.totalorder %s8, 1
    %p65 = por %p63, %p64
    %p66 = scmp.ne.s32.totalorder %s58, %s61
    %p67 = scmp.eq.s32.totalorder %s8, 0
    %p68 = por %p66, %p67
    %p69 = scmp.ne.s32.totalorder %s58, %s61
    %p70 = scmp.eq.s32.totalorder %s13, 1
    %p71 = por %p69, %p70
    %p72 = scmp.ne.s32.totalorder %s61, %s62
    %p73 = scmp.eq.s32.totalorder %s13, 0
    %p74 = por %p72, %p73
    %p75 = scmp.ne.s32.totalorder %s61, %s62
    %p76 = scmp.eq.s32.totalorder %s14, 1
    %p77 = por %p75, %p76
    %p79 = scmp.ne.s32.totalorder %s62, %s78
    %p80 = scmp.eq.s32.totalorder %s14, 0
    %p81 = por %p79, %p80
    %s82 = ssub.s32 %s15, %s27
    %s83 = ssub.s32 %s16, %s23
    %s84 = sor.u32 %s82, %s83
    %p85 = scmp.eq.s32.totalorder %s84, 0
    %s87 = sadd.s32 %s86, 1
    %s88 = scalar_select %p85, %s86, %s87
    %p91 = pneg %p85
    %p92 = scmp.eq.s32.totalorder %s8, 1
    %p93 = por %p91, %p92
    %p94 = scmp.ne.s32.totalorder %s86, %s89
    %p95 = scmp.eq.s32.totalorder %s8, 0
    %p96 = por %p94, %p95
    %p97 = scmp.ne.s32.totalorder %s86, %s89
    %p98 = scmp.eq.s32.totalorder %s13, 1
    %p99 = por %p97, %p98
    %p100 = scmp.ne.s32.totalorder %s89, %s90
    %p101 = scmp.eq.s32.totalorder %s13, 0
    %p102 = por %p100, %p101
    %p103 = scmp.ne.s32.totalorder %s89, %s90
    %p104 = scmp.eq.s32.totalorder %s14, 1
    %p105 = por %p103, %p104
    %p107 = scmp.ne.s32.totalorder %s90, %s106
    %p108 = scmp.eq.s32.totalorder %s14, 0
    %p109 = por %p107, %p108
    %p110 = scmp.le.s32.totalorder 1, %s8
    %p111 = scmp.lt.s32.totalorder %s8, 3
    %p112 = pnand %p110, %p111
    %p113 = pneg %p112
    // Predicated region
    $region9: #{down_block.3} parent=5 // pred_check
      _
    $region10: #{down_block.3} parent=5 // pred_check_branch
      %115 = sbr.rel (%p112) target = $region12
    $region11: #{down_block.3} parent=5 // pred_region
      %s116 = ssub.s32 %s8, 1
    $region12: #{down_block.3} parent=5 // pred_fallthru
      _
    %p117 = scmp.lt.s32.totalorder %s8, 2
    // Predicated region
    $region13: #{down_block.3} parent=5 // pred_check
      %p118 = pneg %p117
    $region14: #{down_block.3} parent=5 // pred_check_branch
      %120 = sbr.rel (%p118) target = $region16
    $region15: #{down_block.3} parent=5 // pred_region
      // Predicated region
      $region17: #{down_block.3} parent=15 // pred_check
        %p121 = pneg %p42
      $region18: #{down_block.3} parent=15 // pred_check_branch
        %123 = sbr.rel (%p121) target = $region20
      $region19: #{down_block.3} parent=15 // pred_region
        %p124 = scmp.lt.s32.totalorder %s15, 1
        %s125 = scalar_select %p124, %s15, 1
        %p126 = scmp.lt.s32.totalorder %s16, 0
        %s127 = scalar_select %p126, %s16, 0
        %s128 = sadd.s32 %s127, %s125
        %s129 = smul.addr %s128, 4
        %s130 = scalar_lea.vmem %s0, %s129
      $region20: #{down_block.3} parent=15 // pred_fallthru
        _
      // Predicated region
      $region21: #{down_block.3} parent=15 // pred_check
        %p131 = pneg %p68
      $region22: #{down_block.3} parent=15 // pred_check_branch
        %133 = sbr.rel (%p131) target = $region24
      $region23: #{down_block.3} parent=15 // pred_region
        %p134 = scmp.lt.s32.totalorder %s15, 1
        %s135 = scalar_select %p134, %s15, 1
        %s136 = smul.addr %s135, 4
        %s137 = scalar_lea.vmem %s1, %s136
      $region24: #{down_block.3} parent=15 // pred_fallthru
        _
    $region16: #{down_block.3} parent=5 // pred_fallthru
      _
    %p138 = scmp.le.s32.totalorder 1, %s8
    %p139 = scmp.lt.s32.totalorder %s8, 3
    %p140 = pnand %p138, %p139
    %p141 = pneg %p140
    // Predicated region
    $region25: #{down_block.3} parent=5 // pred_check
      _
    $region26: #{down_block.3} parent=5 // pred_check_branch
      %143 = sbr.rel (%p140) target = $region28
    $region27: #{down_block.3} parent=5 // pred_region
      %s144 = ssub.s32 %s8, 1
      %p145 = scmp.lt.s32.totalorder %s17, 1
      %s146 = scalar_select %p145, %s17, 1
      %p147 = scmp.lt.s32.totalorder %s18, 0
      %s148 = scalar_select %p147, %s18, 0
      %s149 = sadd.s32 %s148, %s146
      %s150 = smul.addr %s149, 4
      %s151 = scalar_lea.vmem %s0, %s150
      %p152 = pneg %p48
      %p153 = pneg %p45
      %p154 = scmp.lt.s32.totalorder %s17, 1
      %s155 = scalar_select %p154, %s17, 1
      %s156 = smul.addr %s155, 4
      %s157 = scalar_lea.vmem %s1, %s156
      %p158 = pneg %p74
      %p159 = pneg %p71
      %p160 = pneg %p102
      %p161 = pneg %p99
      %p162 = scmp.lt.s32.totalorder %s17, 1
      %s163 = scalar_select %p162, %s17, 1
      %p164 = scmp.lt.s32.totalorder %s18, 0
      %s165 = scalar_select %p164, %s18, 0
      %s166 = sadd.s32 %s165, %s163
      %s167 = smul.addr %s166, 4
      %s168 = scalar_lea.vmem %s2, %s167
      %p169 = scmp.lt.s32.totalorder %s17, 1
      %s170 = scalar_select %p169, %s17, 1
      %p171 = scmp.lt.s32.totalorder %s18, 0
      %s172 = scalar_select %p171, %s18, 0
      %s173 = sadd.s32 %s172, %s170
      %s174 = smul.addr %s173, 4
      %s175 = scalar_lea.vmem %s0, %s174
      %p176 = scmp.lt.s32.totalorder %s17, 1
      %s177 = scalar_select %p176, %s17, 1
      %s178 = smul.addr %s177, 4
      %s179 = scalar_lea.vmem %s1, %s178
      %p180 = scmp.lt.s32.totalorder %s17, 1
      %s181 = scalar_select %p180, %s17, 1
      %p182 = scmp.lt.s32.totalorder %s18, 0
      %s183 = scalar_select %p182, %s18, 0
      %s184 = sadd.s32 %s183, %s181
      %s185 = smul.addr %s184, 4
      %s186 = scalar_lea.vmem %s2, %s185
      %v187 = vld [vmem:[%s179] sm:$0xf]
      %v188 = vld [vmem:[%s175] sm:$0xf]
      %190 = vset.pattern.permute.xlu0 0
      %191 = vperm.xlu0 %190, %v187
      %v192 = vpop.permute.xlu0 %191
      %v194 = vmul.f32 %v188, %v192
      %195 = vset.pattern.permute.xlu0 1
      %196 = vperm.xlu0 %195, %v187
      %v197 = vpop.permute.xlu0 %196
      %v199 = vadd.f32 %v194, %v197
      %vm200 = vcmask 519168
      %201 = vst.msk [vmem:[%s186] sm:$0xf] %vm200, %v199
      %p202 = scmp.lt.s32.totalorder %s17, 1
      %s203 = scalar_select %p202, %s17, 1
      %p204 = scmp.lt.s32.totalorder %s18, 0
      %s205 = scalar_select %p204, %s18, 0
      %s206 = sadd.s32 %s205, %s203
      %s207 = smul.addr %s206, 4
      %s208 = scalar_lea.vmem %s2, %s207
      // Predicated region
      $region29: #{down_block.3} parent=27 // pred_check
        %p209 = pneg %p99
      $region30: #{down_block.3} parent=27 // pred_check_branch
        %211 = sbr.rel (%p209) target = $region32
      $region31: #{down_block.3} parent=27 // pred_region
        _
      $region32: #{down_block.3} parent=27 // pred_fallthru
        _
    $region28: #{down_block.3} parent=5 // pred_fallthru
      _
    %p212 = scmp.le.s32.totalorder 2, %s8
    // Predicated region
    $region33: #{down_block.3} parent=5 // pred_check
      %p213 = pneg %p212
    $region34: #{down_block.3} parent=5 // pred_check_branch
      %215 = sbr.rel (%p213) target = $region36
    $region35: #{down_block.3} parent=5 // pred_region
      %s216 = ssub.s32 %s8, 2
      // Predicated region
      $region37: #{down_block.3} parent=35 // pred_check
        %p217 = pneg %p105
      $region38: #{down_block.3} parent=35 // pred_check_branch
        %219 = sbr.rel (%p217) target = $region40
      $region39: #{down_block.3} parent=35 // pred_region
        %p220 = scmp.lt.s32.totalorder %s19, 1
        %s221 = scalar_select %p220, %s19, 1
        %p222 = scmp.lt.s32.totalorder %s20, 0
        %s223 = scalar_select %p222, %s20, 0
        %s224 = sadd.s32 %s223, %s221
        %s225 = smul.addr %s224, 4
        %s226 = scalar_lea.vmem %s2, %s225
      $region40: #{down_block.3} parent=35 // pred_fallthru
        _
    $region36: #{down_block.3} parent=5 // pred_fallthru
      _
  $region6: #{down_block.3} parent=0 // loop_footer
    %s12 = sadd.s32 1, %s8
  $region7: #{down_block.3} parent=0 // loop_footer_branch
    %7 = sbr.rel target = $region3
  $region8: #{down_block.3} parent=0 // loop_exit
    _

// kernel: down_block.2
$region0: #{down_block.2}
  #allocation0 [shape = 'u32[]', space=smem, size = 0x4, offset = 0x4, fixed_abs, tag = 'smem constant byte address 0x4 - core index']
  #allocation1 [shape = 'u32[144,128]{1,0:T(1,128)}', space=vmem, size = 0x12000, scoped, tag = 'internal scratch']
  %s0 = inlined_call_operand.hbm [shape: f32[2,4,16,16], index: 0, kind: input, shape index: {}]
  %s1 = inlined_call_operand.vmem [shape: f32[4,5], index: 1, kind: input, shape index: {}]
  %s2 = inlined_call_operand.vmem [shape: f32[16,8], index: 2, kind: input, shape index: {}]
  %s3 = inlined_call_operand.vmem [shape: f32[16,8], index: 3, kind: input, shape index: {}]
  %s4 = inlined_call_operand.vmem [shape: f32[2,4,64], index: 4, kind: output, shape index: {0}]
  %s5 = inlined_call_operand.vmem [shape: f32[2,4,2], index: 5, kind: output, shape index: {1}]
  %6 = xla_tuple %s4, %s5
  %s7 = sld [smem:[#allocation0]]
  $region65: #{down_block.2} parent=0
    _
  %s9 = ssub.s32 1, %s7
  %s10 = scalar_select 0, %s9, %s7
  $region1: #{down_block.2} parent=0
    #allocation2 [shape = 'u8[65536]{0}', space=vmem, size = 0x10000, scoped, tag = 'input window, operand 0']
    #allocation3 [shape = 's32[2]{0}', space=sflag, size = 0x8, scoped, tag = 'scoped memory for down_block.2']
    %11 = vsyncpa [#allocation3], 0
    %s12 = scalar_lea.sflag [#allocation3], 1
    %13 = vsyncpa %s12, 0
    loop: start=0, step=1, limit=4
    $region2: #{down_block.2} parent=1 // loop_pre_header
      _
    $region3: #{down_block.2} parent=1 // loop_header
      %s15 = sphi 0, %s19
      %p16 = scmp.ge.s32.totalorder %s15, 4
      %s22 = sphi 0, %s34
      %s23 = sphi 0, %s30
      %s24 = sphi 0, %s22
      %s25 = sphi 0, %s23
      %s26 = sphi 0, %s24
      %s27 = sphi 0, %s25
      %s39 = sphi 0, %s41
      %s42 = sphi 0, %s39
      %s43 = sphi 0, %s42
      %s59 = sphi 0, %s43
      %s63 = sphi 0, %s63
      %s65 = sphi 0, %s63
      %s66 = sphi 0, %s65
      %s80 = sphi 0, %s66
      %s84 = sphi 0, %s84
      %s86 = sphi 0, %s84
      %s87 = sphi 0, %s86
      %s101 = sphi 0, %s87
      %s105 = sphi 0, %s105
      %s107 = sphi 0, %s105
      %s108 = sphi 0, %s107
      %s122 = sphi 0, %s108
      %s130 = sphi 0, %s132
      %s133 = sphi 0, %s130
      %s134 = sphi 0, %s133
      %s150 = sphi 0, %s134
      %s156 = sphi 0, %s158
      %s159 = sphi 0, %s156
      %s160 = sphi 0, %s159
      %s176 = sphi 0, %s160
    $region4: #{down_block.2} parent=1 // loop_header_branch
      %18 = sbr.rel (%p16) target = $region8
    $region5: #{down_block.2} parent=1 // loop_body
      %s20 = ssub.s32 %s15, 1
      %s21 = ssub.s32 %s15, 2
      %s28 = sadd.s32 1, %s23
      %p29 = scmp.ge.s32.totalorder %s28, 1
      %s30 = scalar_select %p29, 0, %s28
      %s31 = sadd.s32 1, %s22
      %s32 = scalar_select %p29, %s31, %s22
      %p33 = scmp.ge.s32.totalorder %s32, 2
      %s34 = scalar_select %p33, 0, %s32
      %s35 = ssub.s32 %s22, %s34
      %s36 = ssub.s32 %s23, %s30
      %s37 = sor.u32 %s35, %s36
      %p38 = scmp.eq.s32.totalorder %s37, 0
      %s40 = sadd.s32 %s39, 1
      %s41 = scalar_select %p38, %s39, %s40
      %p44 = pneg %p38
      %p45 = scmp.eq.s32.totalorder %s15, 1
      %p46 = por %p44, %p45
      %p47 = scmp.ne.s32.totalorder %s39, %s42
      %p48 = scmp.eq.s32.totalorder %s15, 0
      %p49 = por %p47, %p48
      %p50 = scmp.ne.s32.totalorder %s39, %s42
      %p51 = scmp.eq.s32.totalorder %s20, 1
      %p52 = por %p50, %p51
      %p53 = scmp.ne.s32.totalorder %s42, %s43
      %p54 = scmp.eq.s32.totalorder %s20, 0
      %p55 = por %p53, %p54
      %p56 = scmp.ne.s32.totalorder %s42, %s43
      %p57 = scmp.eq.s32.totalorder %s21, 1
      %p58 = por %p56, %p57
      %p60 = scmp.ne.s32.totalorder %s43, %s59
      %p61 = scmp.eq.s32.totalorder %s21, 0
      %p62 = por %p60, %p61
      %s64 = sadd.s32 %s63, 1
      %p67 = scmp.eq.s32.totalorder %s15, 1
      %p68 = scmp.ne.s32.totalorder %s63, %s65
      %p69 = scmp.eq.s32.totalorder %s15, 0
      %p70 = por %p68, %p69
      %p71 = scmp.ne.s32.totalorder %s63, %s65
      %p72 = scmp.eq.s32.totalorder %s20, 1
      %p73 = por %p71, %p72
      %p74 = scmp.ne.s32.totalorder %s65, %s66
      %p75 = scmp.eq.s32.totalorder %s20, 0
      %p76 = por %p74, %p75
      %p77 = scmp.ne.s32.totalorder %s65, %s66
      %p78 = scmp.eq.s32.totalorder %s21, 1
      %p79 = por %p77, %p78
      %p81 = scmp.ne.s32.totalorder %s66, %s80
      %p82 = scmp.eq.s32.totalorder %s21, 0
      %p83 = por %p81, %p82
      %s85 = sadd.s32 %s84, 1
      %p88 = scmp.eq.s32.totalorder %s15, 1
      %p89 = scmp.ne.s32.totalorder %s84, %s86
      %p90 = scmp.eq.s32.totalorder %s15, 0
      %p91 = por %p89, %p90
      %p92 = scmp.ne.s32.totalorder %s84, %s86
      %p93 = scmp.eq.s32.totalorder %s20, 1
      %p94 = por %p92, %p93
      %p95 = scmp.ne.s32.totalorder %s86, %s87
      %p96 = scmp.eq.s32.totalorder %s20, 0
      %p97 = por %p95, %p96
      %p98 = scmp.ne.s32.totalorder %s86, %s87
      %p99 = scmp.eq.s32.totalorder %s21, 1
      %p100 = por %p98, %p99
      %p102 = scmp.ne.s32.totalorder %s87, %s101
      %p103 = scmp.eq.s32.totalorder %s21, 0
      %p104 = por %p102, %p103
      %s106 = sadd.s32 %s105, 1
      %p109 = scmp.eq.s32.totalorder %s15, 1
      %p110 = scmp.ne.s32.totalorder %s105, %s107
      %p111 = scmp.eq.s32.totalorder %s15, 0
      %p112 = por %p110, %p111
      %p113 = scmp.ne.s32.totalorder %s105, %s107
      %p114 = scmp.eq.s32.totalorder %s20, 1
      %p115 = por %p113, %p114
      %p116 = scmp.ne.s32.totalorder %s107, %s108
      %p117 = scmp.eq.s32.totalorder %s20, 0
      %p118 = por %p116, %p117
      %p119 = scmp.ne.s32.totalorder %s107, %s108
      %p120 = scmp.eq.s32.totalorder %s21, 1
      %p121 = por %p119, %p120
      %p123 = scmp.ne.s32.totalorder %s108, %s122
      %p124 = scmp.eq.s32.totalorder %s21, 0
      %p125 = por %p123, %p124
      %s126 = ssub.s32 %s22, %s34
      %s127 = ssub.s32 %s23, %s30
      %s128 = sor.u32 %s126, %s127
      %p129 = scmp.eq.s32.totalorder %s128, 0
      %s131 = sadd.s32 %s130, 1
      %s132 = scalar_select %p129, %s130, %s131
      %p135 = pneg %p129
      %p136 = scmp.eq.s32.totalorder %s15, 1
      %p137 = por %p135, %p136
      %p138 = scmp.ne.s32.totalorder %s130, %s133
      %p139 = scmp.eq.s32.totalorder %s15, 0
      %p140 = por %p138, %p139
      %p141 = scmp.ne.s32.totalorder %s130, %s133
      %p142 = scmp.eq.s32.totalorder %s20, 1
      %p143 = por %p141, %p142
      %p144 = scmp.ne.s32.totalorder %s133, %s134
      %p145 = scmp.eq.s32.totalorder %s20, 0
      %p146 = por %p144, %p145
      %p147 = scmp.ne.s32.totalorder %s133, %s134
      %p148 = scmp.eq.s32.totalorder %s21, 1
      %p149 = por %p147, %p148
      %p151 = scmp.ne.s32.totalorder %s134, %s150
      %p152 = scmp.eq.s32.totalorder %s21, 0
      %p153 = por %p151, %p152
      %s154 = ssub.s32 %s22, %s34
      %p155 = scmp.eq.s32.totalorder %s154, 0
      %s157 = sadd.s32 %s156, 1
      %s158 = scalar_select %p155, %s156, %s157
      %p161 = pneg %p155
      %p162 = scmp.eq.s32.totalorder %s15, 1
      %p163 = por %p161, %p162
      %p164 = scmp.ne.s32.totalorder %s156, %s159
      %p165 = scmp.eq.s32.totalorder %s15, 0
      %p166 = por %p164, %p165
      %p167 = scmp.ne.s32.totalorder %s156, %s159
      %p168 = scmp.eq.s32.totalorder %s20, 1
      %p169 = por %p167, %p168
      %p170 = scmp.ne.s32.totalorder %s159, %s160
      %p171 = scmp.eq.s32.totalorder %s20, 0
      %p172 = por %p170, %p171
      %p173 = scmp.ne.s32.totalorder %s159, %s160
      %p174 = scmp.eq.s32.totalorder %s21, 1
      %p175 = por %p173, %p174
      %p177 = scmp.ne.s32.totalorder %s160, %s176
      %p178 = scmp.eq.s32.totalorder %s21, 0
      %p179 = por %p177, %p178
      %p180 = scmp.le.s32.totalorder 1, %s15
      %p181 = scmp.lt.s32.totalorder %s15, 3
      %p182 = pnand %p180, %p181
      %p183 = pneg %p182
      // Predicated region
      $region9: #{down_block.2} parent=5 // pred_check
        _
      $region10: #{down_block.2} parent=5 // pred_check_branch
        %185 = sbr.rel (%p182) target = $region12
      $region11: #{down_block.2} parent=5 // pred_region
        %s186 = ssub.s32 %s15, 1
        // Predicated region
        $region13: #{down_block.2} parent=11 // pred_check
          %p187 = pneg %p76
        $region14: #{down_block.2} parent=11 // pred_check_branch
          %189 = sbr.rel (%p187) target = $region16
        $region15: #{down_block.2} parent=11 // pred_region
          _
        $region16: #{down_block.2} parent=11 // pred_fallthru
          _
        // Predicated region
        $region17: #{down_block.2} parent=11 // pred_check
          %p190 = pneg %p97
        $region18: #{down_block.2} parent=11 // pred_check_branch
          %192 = sbr.rel (%p190) target = $region20
        $region19: #{down_block.2} parent=11 // pred_region
          _
        $region20: #{down_block.2} parent=11 // pred_fallthru
          _
        // Predicated region
        $region21: #{down_block.2} parent=11 // pred_check
          %p193 = pneg %p118
        $region22: #{down_block.2} parent=11 // pred_check_branch
          %195 = sbr.rel (%p193) target = $region24
        $region23: #{down_block.2} parent=11 // pred_region
          _
        $region24: #{down_block.2} parent=11 // pred_fallthru
          _
      $region12: #{down_block.2} parent=5 // pred_fallthru
        _
      %p196 = scmp.lt.s32.totalorder %s15, 2
      // Predicated region
      $region25: #{down_block.2} parent=5 // pred_check
        %p197 = pneg %p196
      $region26: #{down_block.2} parent=5 // pred_check_branch
        %199 = sbr.rel (%p197) target = $region28
      $region27: #{down_block.2} parent=5 // pred_region
        // Predicated region
        $region29: #{down_block.2} parent=27 // pred_check
          %p200 = pneg %p49
        $region30: #{down_block.2} parent=27 // pred_check_branch
          %202 = sbr.rel (%p200) target = $region32
        $region31: #{down_block.2} parent=27 // pred_region
          %s203 = sand.u32 %s39, 1
          %s204 = scalar_lea.sflag [#allocation3], %s203
          %s205 = sand.u32 %s39, 1
          %s206 = smul.addr %s205, 64
          %s207 = scalar_lea.vmem [#allocation2], %s206
          %s208 = smul.u32 2, %s23
          %s210 = ssub.s32 1024, 1024
          %211 = vsyncadd %s204, %s210
          %s212 = smul.addr %s22, 8
          %s213 = sadd.s32 %s208, %s212
          %s214 = smul.addr %s213, 128
          %s215 = scalar_lea.hbm %s0, %s214
          %s216 = sshll.u32 %s207, 4
          %s217 = int_to_ptr.vmem [resolvable:$true] %s216
          %222 = dma.hbm_to_vmem [thread:$0]  %s215, 1024, %s217, %s204, 128, 128, 8
        $region32: #{down_block.2} parent=27 // pred_fallthru
          _
      $region28: #{down_block.2} parent=5 // pred_fallthru
        _
      %p223 = scmp.le.s32.totalorder 1, %s15
      %p224 = scmp.lt.s32.totalorder %s15, 3
      %p225 = pnand %p223, %p224
      %p226 = pneg %p225
      // Predicated region
      $region33: #{down_block.2} parent=5 // pred_check
        _
      $region34: #{down_block.2} parent=5 // pred_check_branch
        %228 = sbr.rel (%p225) target = $region36
      $region35: #{down_block.2} parent=5 // pred_region
        %s229 = ssub.s32 %s15, 1
        %s230 = sand.u32 %s42, 1
        %s231 = scalar_lea.sflag [#allocation3], %s230
        %s232 = sand.u32 %s42, 1
        %s233 = smul.addr %s232, 64
        %s234 = scalar_lea.vmem [#allocation2], %s233
        // Predicated region
        $region37: #{down_block.2} parent=35 // pred_check
          %p235 = pneg %p55
        $region38: #{down_block.2} parent=35 // pred_check_branch
          %237 = sbr.rel (%p235) target = $region40
        $region39: #{down_block.2} parent=35 // pred_region
          %238 = dma.done %s231, 1024
        $region40: #{down_block.2} parent=35 // pred_fallthru
          _
        %s239 = sand.u32 %s42, 1
        %s240 = scalar_lea.sflag [#allocation3], %s239
        %s241 = sand.u32 %s42, 1
        %s242 = smul.addr %s241, 64
        %s243 = scalar_lea.vmem [#allocation2], %s242
        %p244 = pneg %p55
        %p245 = pneg %p52
        %p246 = pneg %p76
        %p247 = pneg %p73
        %p248 = pneg %p97
        %p249 = pneg %p94
        %p250 = pneg %p118
        %p251 = pneg %p115
        %p252 = pneg %p146
        %p253 = pneg %p143
        %p254 = scmp.lt.s32.totalorder %s24, 1
        %s255 = scalar_select %p254, %s24, 1
        %p256 = scmp.lt.s32.totalorder %s25, 0
        %s257 = scalar_select %p256, %s25, 0
        %s258 = sadd.s32 %s257, %s255
        %s259 = smul.addr %s258, 4
        %s260 = scalar_lea.vmem %s4, %s259
        %p261 = pneg %p172
        %p262 = pneg %p169
        %p263 = scmp.lt.s32.totalorder %s24, 1
        %s264 = scalar_select %p263, %s24, 1
        %s265 = smul.addr %s264, 4
        %s266 = scalar_lea.vmem %s5, %s265
        %s267 = smul.u32 2, %s25
        %p268 = scmp.lt.s32.totalorder %s24, 1
        %s269 = scalar_select %p268, %s24, 1
        %p270 = scmp.lt.s32.totalorder %s25, 0
        %s271 = scalar_select %p270, %s25, 0
        %s272 = sadd.s32 %s271, %s269
        %s273 = smul.addr %s272, 4
        %s274 = scalar_lea.vmem %s4, %s273
        %p275 = scmp.lt.s32.totalorder %s24, 1
        %s276 = scalar_select %p275, %s24, 1
        %s277 = smul.addr %s276, 4
        %s278 = scalar_lea.vmem %s5, %s277
        %v279 = vld [vmem:[%s1] sm:$0xf]
        %v280 = vld [vmem:[%s2] sm:$0xff]
        %v281 = vld [vmem:[%s2 + $0x8] sm:$0xff]
        %v282 = vld [vmem:[%s3] sm:$0xff]
        %v283 = vld [vmem:[%s3 + $0x8] sm:$0xff]
        %v284 = vld [vmem:[%s234] sm:$0x1]
        %v285 = vld [vmem:[%s234 + $0x10] sm:$0x1]
        %v286 = vld [vmem:[%s234 + $0x20] sm:$0x1]
        %v287 = vld [vmem:[%s234 + $0x30] sm:$0x1]
        %v288 = vld [vmem:[%s234 + $0x1] sm:$0x1]
        %v289 = vld [vmem:[%s234 + $0x11] sm:$0x1]
        %v290 = vld [vmem:[%s234 + $0x21] sm:$0x1]
        %v291 = vld [vmem:[%s234 + $0x31] sm:$0x1]
        %293 = vset.pattern.permute.xlu0 0
        %294 = vperm.xlu0 %293, %v279
        %v295 = vpop.permute.xlu0 %294
        %v296 = vrot.slane %v295, 1
        %v297 = vrot.slane %v295, 2
        %v298 = vrot.slane %v295, 3
        %v303 = vmul.f32 %v284, %v295
        %v304 = vmul.f32 %v285, %v296
        %v305 = vmul.f32 %v286, %v297
        %v306 = vmul.f32 %v287, %v298
        %307 = vset.pattern.permute.xlu0 2
        %308 = vperm.xlu0 %307, %v279
        %v309 = vpop.permute.xlu0 %308
        %v310 = vrot.slane %v309, 1
        %v311 = vrot.slane %v309, 2
        %v312 = vrot.slane %v309, 3
        %v317 = vmul.f32 %v288, %v309
        %v318 = vmul.f32 %v289, %v310
        %v319 = vmul.f32 %v290, %v311
        %v320 = vmul.f32 %v291, %v312
        %v321 = vadd.f32 %v303, %v317
        %v322 = vadd.f32 %v304, %v318
        %v323 = vadd.f32 %v305, %v319
        %v324 = vadd.f32 %v306, %v320
        %325 = vset.pattern.permute.xlu0 1
        %326 = vperm.xlu0 %325, %v279
        %v327 = vpop.permute.xlu0 %326
        %v328 = vrot.slane %v327, 1
        %v329 = vrot.slane %v327, 2
        %v330 = vrot.slane %v327, 3
        %v335 = vmul.f32 %v284, %v327
        %v336 = vmul.f32 %v285, %v328
        %v337 = vmul.f32 %v286, %v329
        %v338 = vmul.f32 %v287, %v330
        %339 = vset.pattern.permute.xlu0 3
        %340 = vperm.xlu0 %339, %v279
        %v341 = vpop.permute.xlu0 %340
        %v342 = vrot.slane %v341, 1
        %v343 = vrot.slane %v341, 2
        %v344 = vrot.slane %v341, 3
        %v349 = vmul.f32 %v288, %v341
        %v350 = vmul.f32 %v289, %v342
        %v351 = vmul.f32 %v290, %v343
        %v352 = vmul.f32 %v291, %v344
        %v353 = vadd.f32 %v335, %v349
        %v354 = vadd.f32 %v336, %v350
        %v355 = vadd.f32 %v337, %v351
        %v356 = vadd.f32 %v338, %v352
        %v361 = vrot.slane %v354, 7
        %vm362 = vcmask 1041409
        %v363 = vsel %vm362, %v361, %v353
        %v364 = vrot.slane %v355, 6
        %vm365 = vcmask 1042434
        %v366 = vsel %vm365, %v364, %v363
        %v367 = vrot.slane %v356, 5
        %vm368 = vcmask 1043459
        %v369 = vsel %vm368, %v367, %v366
        %vm370 = vcmask 130048
        %v371 = vsel %vm370, %v369, 0
        %373 = vmatprep.subr.mxu0 0.0
        %374 = vmatpush1.msra.mxu0 %v282
        %375 = vmatprep.subr.mxu0 0.0
        %376 = vmatpush1.msra.mxu0 %v283
        %377 = vmatprep.subr.mxu0 0.0
        %378 = vmatpush1.msra.mxu0 0.0
        %379 = vmatprep.subr.mxu0 0.0
        %380 = vmatpush1.msra.mxu0 0.0
        %381 = vmatprep.subr.mxu0 0.0
        %382 = vmatpush1.msra.mxu0 0.0
        %383 = vmatprep.subr.mxu0 0.0
        %384 = vmatpush1.msra.mxu0 0.0
        %385 = vmatprep.subr.mxu0 0.0
        %386 = vmatpush1.msra.mxu0 0.0
        %387 = vmatprep.subr.mxu0 0.0
        %388 = vmatpush1.msra.mxu0 0.0
        %389 = vmatprep.subr.mxu0 0.0
        %390 = vmatpush1.msra.mxu0 0.0
        %391 = vmatprep.subr.mxu0 0.0
        %392 = vmatpush1.msra.mxu0 0.0
        %393 = vmatprep.subr.mxu0 0.0
        %394 = vmatpush1.msra.mxu0 0.0
        %395 = vmatprep.subr.mxu0 0.0
        %396 = vmatpush1.msra.mxu0 0.0
        %397 = vmatprep.subr.mxu0 0.0
        %398 = vmatpush1.msra.mxu0 0.0
        %399 = vmatprep.subr.mxu0 0.0
        %400 = vmatpush1.msra.mxu0 0.0
        %401 = vmatprep.subr.mxu0 0.0
        %402 = vmatpush1.msra.mxu0 0.0
        %403 = vmatprep.subr.mxu0 0.0
        %404 = vmatpush1.msra.mxu0 0.0
        %405 = vmatprep.subr.mxu0 0.0
        %406 = vmatpush1.msra.mxu0 0.0
        %407 = vmatprep.subr.mxu0 0.0
        %408 = vmatpush1.msra.mxu0 0.0
        %409 = vmatprep.subr.mxu0 0.0
        %410 = vmatpush1.msra.mxu0 0.0
        %411 = vmatprep.subr.mxu0 0.0
        %412 = vmatpush1.msra.mxu0 0.0
        %413 = vmatprep.subr.mxu0 0.0
        %414 = vmatpush1.msra.mxu0 0.0
        %415 = vmatprep.subr.mxu0 0.0
        %416 = vmatpush1.msra.mxu0 0.0
        %417 = vmatprep.subr.mxu0 0.0
        %418 = vmatpush1.msra.mxu0 0.0
        %419 = vmatprep.subr.mxu0 0.0
        %420 = vmatpush1.msra.mxu0 0.0
        %421 = vmatprep.subr.mxu0 0.0
        %422 = vmatpush1.msra.mxu0 0.0
        %423 = vmatprep.subr.mxu0 0.0
        %424 = vmatpush1.msra.mxu0 0.0
        %425 = vmatprep.subr.mxu0 0.0
        %426 = vmatpush1.msra.mxu0 0.0
        %427 = vmatprep.subr.mxu0 0.0
        %428 = vmatpush1.msra.mxu0 0.0
        %429 = vmatprep.subr.mxu0 0.0
        %430 = vmatpush1.msra.mxu0 0.0
        %431 = vmatprep.subr.mxu0 0.0
        %432 = vmatpush1.msra.mxu0 0.0
        %433 = vmatprep.subr.mxu0 0.0
        %434 = vmatpush1.msra.mxu0 0.0
        %435 = vmatprep.subr.mxu0 0.0
        %436 = vmatpush1.msra.mxu0 0.0
        %437 = vmatprep.mubr.f32.mxu0 0.0
        %438 = vmatmul.mubr.f32.gmra.mrb[0].mxu0 %v371
        %v439 = vpop.f32.mrb[0].mxu0
        %v440 = vadd.f32 0.0, %v439
        %v441 = vpop.f32.mrb[0].mxu0
        %442 = vdwg.mxu0
        %v447 = vrot.slane %v322, 7
        %v448 = vsel %vm362, %v447, %v321
        %v449 = vrot.slane %v323, 6
        %v450 = vsel %vm365, %v449, %v448
        %v451 = vrot.slane %v324, 5
        %v452 = vsel %vm368, %v451, %v450
        %v453 = vsel %vm370, %v452, 0
        %455 = vmatprep.subr.mxu0 0.0
        %456 = vmatpush1.msra.mxu0 %v280
        %457 = vmatprep.subr.mxu0 0.0
        %458 = vmatpush1.msra.mxu0 %v281
        %459 = vmatprep.subr.mxu0 0.0
        %460 = vmatpush1.msra.mxu0 0.0
        %461 = vmatprep.subr.mxu0 0.0
        %462 = vmatpush1.msra.mxu0 0.0
        %463 = vmatprep.subr.mxu0 0.0
        %464 = vmatpush1.msra.mxu0 0.0
        %465 = vmatprep.subr.mxu0 0.0
        %466 = vmatpush1.msra.mxu0 0.0
        %467 = vmatprep.subr.mxu0 0.0
        %468 = vmatpush1.msra.mxu0 0.0
        %469 = vmatprep.subr.mxu0 0.0
        %470 = vmatpush1.msra.mxu0 0.0
        %471 = vmatprep.subr.mxu0 0.0
        %472 = vmatpush1.msra.mxu0 0.0
        %473 = vmatprep.subr.mxu0 0.0
        %474 = vmatpush1.msra.mxu0 0.0
        %475 = vmatprep.subr.mxu0 0.0
        %476 = vmatpush1.msra.mxu0 0.0
        %477 = vmatprep.subr.mxu0 0.0
        %478 = vmatpush1.msra.mxu0 0.0
        %479 = vmatprep.subr.mxu0 0.0
        %480 = vmatpush1.msra.mxu0 0.0
        %481 = vmatprep.subr.mxu0 0.0
        %482 = vmatpush1.msra.mxu0 0.0
        %483 = vmatprep.subr.mxu0 0.0
        %484 = vmatpush1.msra.mxu0 0.0
        %485 = vmatprep.subr.mxu0 0.0
        %486 = vmatpush1.msra.mxu0 0.0
        %487 = vmatprep.subr.mxu0 0.0
        %488 = vmatpush1.msra.mxu0 0.0
        %489 = vmatprep.subr.mxu0 0.0
        %490 = vmatpush1.msra.mxu0 0.0
        %491 = vmatprep.subr.mxu0 0.0
        %492 = vmatpush1.msra.mxu0 0.0
        %493 = vmatprep.subr.mxu0 0.0
        %494 = vmatpush1.msra.mxu0 0.0
        %495 = vmatprep.subr.mxu0 0.0
        %496 = vmatpush1.msra.mxu0 0.0
        %497 = vmatprep.subr.mxu0 0.0
        %498 = vmatpush1.msra.mxu0 0.0
        %499 = vmatprep.subr.mxu0 0.0
        %500 = vmatpush1.msra.mxu0 0.0
        %501 = vmatprep.subr.mxu0 0.0
        %502 = vmatpush1.msra.mxu0 0.0
        %503 = vmatprep.subr.mxu0 0.0
        %504 = vmatpush1.msra.mxu0 0.0
        %505 = vmatprep.subr.mxu0 0.0
        %506 = vmatpush1.msra.mxu0 0.0
        %507 = vmatprep.subr.mxu0 0.0
        %508 = vmatpush1.msra.mxu0 0.0
        %509 = vmatprep.subr.mxu0 0.0
        %510 = vmatpush1.msra.mxu0 0.0
        %511 = vmatprep.subr.mxu0 0.0
        %512 = vmatpush1.msra.mxu0 0.0
        %513 = vmatprep.subr.mxu0 0.0
        %514 = vmatpush1.msra.mxu0 0.0
        %515 = vmatprep.subr.mxu0 0.0
        %516 = vmatpush1.msra.mxu0 0.0
        %517 = vmatprep.subr.mxu0 0.0
        %518 = vmatpush1.msra.mxu0 0.0
        %519 = vmatprep.mubr.f32.mxu0 0.0
        %520 = vmatmul.mubr.f32.gmra.mrb[0].mxu0 %v453
        %v521 = vpop.f32.mrb[0].mxu0
        %v522 = vadd.f32 %v440, %v521
        %v523 = vpop.f32.mrb[0].mxu0
        %524 = vdwg.mxu0
        %525 = vset.pattern.permute.xlu0 4
        %526 = vperm.xlu0 %525, %v279
        %v527 = vpop.permute.xlu0 %526
        %v529 = vadd.f32 %v522, %v527
        %v530 = vld [vmem:[%s234 + $0x2] sm:$0x1]
        %v531 = vld [vmem:[%s234 + $0x12] sm:$0x1]
        %v532 = vld [vmem:[%s234 + $0x22] sm:$0x1]
        %v533 = vld [vmem:[%s234 + $0x32] sm:$0x1]
        %v534 = vld [vmem:[%s234 + $0x3] sm:$0x1]
        %v535 = vld [vmem:[%s234 + $0x13] sm:$0x1]
        %v536 = vld [vmem:[%s234 + $0x23] sm:$0x1]
        %v537 = vld [vmem:[%s234 + $0x33] sm:$0x1]
        %v538 = vmul.f32 %v530, %v295
        %v539 = vmul.f32 %v531, %v296
        %v540 = vmul.f32 %v532, %v297
        %v541 = vmul.f32 %v533, %v298
        %v542 = vmul.f32 %v534, %v309
        %v543 = vmul.f32 %v535, %v310
        %v544 = vmul.f32 %v536, %v311
        %v545 = vmul.f32 %v537, %v312
        %v546 = vadd.f32 %v538, %v542
        %v547 = vadd.f32 %v539, %v543
        %v548 = vadd.f32 %v540, %v544
        %v549 = vadd.f32 %v541, %v545
        %v550 = vmul.f32 %v530, %v327
        %v551 = vmul.f32 %v531, %v328
        %v552 = vmul.f32 %v532, %v329
        %v553 = vmul.f32 %v533, %v330
        %v554 = vmul.f32 %v534, %v341
        %v555 = vmul.f32 %v535, %v342
        %v556 = vmul.f32 %v536, %v343
        %v557 = vmul.f32 %v537, %v344
        %v558 = vadd.f32 %v550, %v554
        %v559 = vadd.f32 %v551, %v555
        %v560 = vadd.f32 %v552, %v556
        %v561 = vadd.f32 %v553, %v557
        %v566 = vrot.slane %v559, 7
        %v567 = vsel %vm362, %v566, %v558
        %v568 = vrot.slane %v560, 6
        %v569 = vsel %vm365, %v568, %v567
        %v570 = vrot.slane %v561, 5
        %v571 = vsel %vm368, %v570, %v569
        %v572 = vsel %vm370, %v571, 0
        %574 = vmatprep.subr.mxu0 0.0
        %575 = vmatpush1.msra.mxu0 %v282
        %576 = vmatprep.subr.mxu0 0.0
        %577 = vmatpush1.msra.mxu0 %v283
        %578 = vmatprep.subr.mxu0 0.0
        %579 = vmatpush1.msra.mxu0 0.0
        %580 = vmatprep.subr.mxu0 0.0
        %581 = vmatpush1.msra.mxu0 0.0
        %582 = vmatprep.subr.mxu0 0.0
        %583 = vmatpush1.msra.mxu0 0.0
        %584 = vmatprep.subr.mxu0 0.0
        %585 = vmatpush1.msra.mxu0 0.0
        %586 = vmatprep.subr.mxu0 0.0
        %587 = vmatpush1.msra.mxu0 0.0
        %588 = vmatprep.subr.mxu0 0.0
        %589 = vmatpush1.msra.mxu0 0.0
        %590 = vmatprep.subr.mxu0 0.0
        %591 = vmatpush1.msra.mxu0 0.0
        %592 = vmatprep.subr.mxu0 0.0
        %593 = vmatpush1.msra.mxu0 0.0
        %594 = vmatprep.subr.mxu0 0.0
        %595 = vmatpush1.msra.mxu0 0.0
        %596 = vmatprep.subr.mxu0 0.0
        %597 = vmatpush1.msra.mxu0 0.0
        %598 = vmatprep.subr.mxu0 0.0
        %599 = vmatpush1.msra.mxu0 0.0
        %600 = vmatprep.subr.mxu0 0.0
        %601 = vmatpush1.msra.mxu0 0.0
        %602 = vmatprep.subr.mxu0 0.0
        %603 = vmatpush1.msra.mxu0 0.0
        %604 = vmatprep.subr.mxu0 0.0
        %605 = vmatpush1.msra.mxu0 0.0
        %606 = vmatprep.subr.mxu0 0.0
        %607 = vmatpush1.msra.mxu0 0.0
        %608 = vmatprep.subr.mxu0 0.0
        %609 = vmatpush1.msra.mxu0 0.0
        %610 = vmatprep.subr.mxu0 0.0
        %611 = vmatpush1.msra.mxu0 0.0
        %612 = vmatprep.subr.mxu0 0.0
        %613 = vmatpush1.msra.mxu0 0.0
        %614 = vmatprep.subr.mxu0 0.0
        %615 = vmatpush1.msra.mxu0 0.0
        %616 = vmatprep.subr.mxu0 0.0
        %617 = vmatpush1.msra.mxu0 0.0
        %618 = vmatprep.subr.mxu0 0.0
        %619 = vmatpush1.msra.mxu0 0.0
        %620 = vmatprep.subr.mxu0 0.0
        %621 = vmatpush1.msra.mxu0 0.0
        %622 = vmatprep.subr.mxu0 0.0
        %623 = vmatpush1.msra.mxu0 0.0
        %624 = vmatprep.subr.mxu0 0.0
        %625 = vmatpush1.msra.mxu0 0.0
        %626 = vmatprep.subr.mxu0 0.0
        %627 = vmatpush1.msra.mxu0 0.0
        %628 = vmatprep.subr.mxu0 0.0
        %629 = vmatpush1.msra.mxu0 0.0
        %630 = vmatprep.subr.mxu0 0.0
        %631 = vmatpush1.msra.mxu0 0.0
        %632 = vmatprep.subr.mxu0 0.0
        %633 = vmatpush1.msra.mxu0 0.0
        %634 = vmatprep.subr.mxu0 0.0
        %635 = vmatpush1.msra.mxu0 0.0
        %636 = vmatprep.subr.mxu0 0.0
        %637 = vmatpush1.msra.mxu0 0.0
        %638 = vmatprep.mubr.f32.mxu0 0.0
        %639 = vmatmul.mubr.f32.gmra.mrb[0].mxu0 %v572
        %v640 = vpop.f32.mrb[0].mxu0
        %v641 = vadd.f32 0.0, %v640
        %v642 = vpop.f32.mrb[0].mxu0
        %643 = vdwg.mxu0
        %v648 = vrot.slane %v547, 7
        %v649 = vsel %vm362, %v648, %v546
        %v650 = vrot.slane %v548, 6
        %v651 = vsel %vm365, %v650, %v649
        %v652 = vrot.slane %v549, 5
        %v653 = vsel %vm368, %v652, %v651
        %v654 = vsel %vm370, %v653, 0
        %656 = vmatprep.subr.mxu0 0.0
        %657 = vmatpush1.msra.mxu0 %v280
        %658 = vmatprep.subr.mxu0 0.0
        %659 = vmatpush1.msra.mxu0 %v281
        %660 = vmatprep.subr.mxu0 0.0
        %661 = vmatpush1.msra.mxu0 0.0
        %662 = vmatprep.subr.mxu0 0.0
        %663 = vmatpush1.msra.mxu0 0.0
        %664 = vmatprep.subr.mxu0 0.0
        %665 = vmatpush1.msra.mxu0 0.0
        %666 = vmatprep.subr.mxu0 0.0
        %667 = vmatpush1.msra.mxu0 0.0
        %668 = vmatprep.subr.mxu0 0.0
        %669 = vmatpush1.msra.mxu0 0.0
        %670 = vmatprep.subr.mxu0 0.0
        %671 = vmatpush1.msra.mxu0 0.0
        %672 = vmatprep.subr.mxu0 0.0
        %673 = vmatpush1.msra.mxu0 0.0
        %674 = vmatprep.subr.mxu0 0.0
        %675 = vmatpush1.msra.mxu0 0.0
        %676 = vmatprep.subr.mxu0 0.0
        %677 = vmatpush1.msra.mxu0 0.0
        %678 = vmatprep.subr.mxu0 0.0
        %679 = vmatpush1.msra.mxu0 0.0
        %680 = vmatprep.subr.mxu0 0.0
        %681 = vmatpush1.msra.mxu0 0.0
        %682 = vmatprep.subr.mxu0 0.0
        %683 = vmatpush1.msra.mxu0 0.0
        %684 = vmatprep.subr.mxu0 0.0
        %685 = vmatpush1.msra.mxu0 0.0
        %686 = vmatprep.subr.mxu0 0.0
        %687 = vmatpush1.msra.mxu0 0.0
        %688 = vmatprep.subr.mxu0 0.0
        %689 = vmatpush1.msra.mxu0 0.0
        %690 = vmatprep.subr.mxu0 0.0
        %691 = vmatpush1.msra.mxu0 0.0
        %692 = vmatprep.subr.mxu0 0.0
        %693 = vmatpush1.msra.mxu0 0.0
        %694 = vmatprep.subr.mxu0 0.0
        %695 = vmatpush1.msra.mxu0 0.0
        %696 = vmatprep.subr.mxu0 0.0
        %697 = vmatpush1.msra.mxu0 0.0
        %698 = vmatprep.subr.mxu0 0.0
        %699 = vmatpush1.msra.mxu0 0.0
        %700 = vmatprep.subr.mxu0 0.0
        %701 = vmatpush1.msra.mxu0 0.0
        %702 = vmatprep.subr.mxu0 0.0
        %703 = vmatpush1.msra.mxu0 0.0
        %704 = vmatprep.subr.mxu0 0.0
        %705 = vmatpush1.msra.mxu0 0.0
        %706 = vmatprep.subr.mxu0 0.0
        %707 = vmatpush1.msra.mxu0 0.0
        %708 = vmatprep.subr.mxu0 0.0
        %709 = vmatpush1.msra.mxu0 0.0
        %710 = vmatprep.subr.mxu0 0.0
        %711 = vmatpush1.msra.mxu0 0.0
        %712 = vmatprep.subr.mxu0 0.0
        %713 = vmatpush1.msra.mxu0 0.0
        %714 = vmatprep.subr.mxu0 0.0
        %715 = vmatpush1.msra.mxu0 0.0
        %716 = vmatprep.subr.mxu0 0.0
        %717 = vmatpush1.msra.mxu0 0.0
        %718 = vmatprep.subr.mxu0 0.0
        %719 = vmatpush1.msra.mxu0 0.0
        %720 = vmatprep.mubr.f32.mxu0 0.0
        %721 = vmatmul.mubr.f32.gmra.mrb[0].mxu0 %v654
        %v722 = vpop.f32.mrb[0].mxu0
        %v723 = vadd.f32 %v641, %v722
        %v724 = vpop.f32.mrb[0].mxu0
        %725 = vdwg.mxu0
        %v726 = vadd.f32 %v723, %v527
        %v727 = vld [vmem:[%s234 + $0x4] sm:$0x1]
        %v728 = vld [vmem:[%s234 + $0x14] sm:$0x1]
        %v729 = vld [vmem:[%s234 + $0x24] sm:$0x1]
        %v730 = vld [vmem:[%s234 + $0x34] sm:$0x1]
        %v731 = vld [vmem:[%s234 + $0x5] sm:$0x1]
        %v732 = vld [vmem:[%s234 + $0x15] sm:$0x1]
        %v733 = vld [vmem:[%s234 + $0x25] sm:$0x1]
        %v734 = vld [vmem:[%s234 + $0x35] sm:$0x1]
        %v735 = vmul.f32 %v727, %v295
        %v736 = vmul.f32 %v728, %v296
        %v737 = vmul.f32 %v729, %v297
        %v738 = vmul.f32 %v730, %v298
        %v739 = vmul.f32 %v731, %v309
        %v740 = vmul.f32 %v732, %v310
        %v741 = vmul.f32 %v733, %v311
        %v742 = vmul.f32 %v734, %v312
        %v743 = vadd.f32 %v735, %v739
        %v744 = vadd.f32 %v736, %v740
        %v745 = vadd.f32 %v737, %v741
        %v746 = vadd.f32 %v738, %v742
        %v747 = vmul.f32 %v727, %v327
        %v748 = vmul.f32 %v728, %v328
        %v749 = vmul.f32 %v729, %v329
        %v750 = vmul.f32 %v730, %v330
        %v751 = vmul.f32 %v731, %v341
        %v752 = vmul.f32 %v732, %v342
        %v753 = vmul.f32 %v733, %v343
        %v754 = vmul.f32 %v734, %v344
        %v755 = vadd.f32 %v747, %v751
        %v756 = vadd.f32 %v748, %v752
        %v757 = vadd.f32 %v749, %v753
        %v758 = vadd.f32 %v750, %v754
        %v763 = vrot.slane %v756, 7
        %v764 = vsel %vm362, %v763, %v755
        %v765 = vrot.slane %v757, 6
        %v766 = vsel %vm365, %v765, %v764
        %v767 = vrot.slane %v758, 5
        %v768 = vsel %vm368, %v767, %v766
        %v769 = vsel %vm370, %v768, 0
        %771 = vmatprep.subr.mxu0 0.0
        %772 = vmatpush1.msra.mxu0 %v282
        %773 = vmatprep.subr.mxu0 0.0
        %774 = vmatpush1.msra.mxu0 %v283
        %775 = vmatprep.subr.mxu0 0.0
        %776 = vmatpush1.msra.mxu0 0.0
        %777 = vmatprep.subr.mxu0 0.0
        %778 = vmatpush1.msra.mxu0 0.0
        %779 = vmatprep.subr.mxu0 0.0
        %780 = vmatpush1.msra.mxu0 0.0
        %781 = vmatprep.subr.mxu0 0.0
        %782 = vmatpush1.msra.mxu0 0.0
        %783 = vmatprep.subr.mxu0 0.0
        %784 = vmatpush1.msra.mxu0 0.0
        %785 = vmatprep.subr.mxu0 0.0
        %786 = vmatpush1.msra.mxu0 0.0
        %787 = vmatprep.subr.mxu0 0.0
        %788 = vmatpush1.msra.mxu0 0.0
        %789 = vmatprep.subr.mxu0 0.0
        %790 = vmatpush1.msra.mxu0 0.0
        %791 = vmatprep.subr.mxu0 0.0
        %792 = vmatpush1.msra.mxu0 0.0
        %793 = vmatprep.subr.mxu0 0.0
        %794 = vmatpush1.msra.mxu0 0.0
        %795 = vmatprep.subr.mxu0 0.0
        %796 = vmatpush1.msra.mxu0 0.0
        %797 = vmatprep.subr.mxu0 0.0
        %798 = vmatpush1.msra.mxu0 0.0
        %799 = vmatprep.subr.mxu0 0.0
        %800 = vmatpush1.msra.mxu0 0.0
        %801 = vmatprep.subr.mxu0 0.0
        %802 = vmatpush1.msra.mxu0 0.0
        %803 = vmatprep.subr.mxu0 0.0
        %804 = vmatpush1.msra.mxu0 0.0
        %805 = vmatprep.subr.mxu0 0.0
        %806 = vmatpush1.msra.mxu0 0.0
        %807 = vmatprep.subr.mxu0 0.0
        %808 = vmatpush1.msra.mxu0 0.0
        %809 = vmatprep.subr.mxu0 0.0
        %810 = vmatpush1.msra.mxu0 0.0
        %811 = vmatprep.subr.mxu0 0.0
        %812 = vmatpush1.msra.mxu0 0.0
        %813 = vmatprep.subr.mxu0 0.0
        %814 = vmatpush1.msra.mxu0 0.0
        %815 = vmatprep.subr.mxu0 0.0
        %816 = vmatpush1.msra.mxu0 0.0
        %817 = vmatprep.subr.mxu0 0.0
        %818 = vmatpush1.msra.mxu0 0.0
        %819 = vmatprep.subr.mxu0 0.0
        %820 = vmatpush1.msra.mxu0 0.0
        %821 = vmatprep.subr.mxu0 0.0
        %822 = vmatpush1.msra.mxu0 0.0
        %823 = vmatprep.subr.mxu0 0.0
        %824 = vmatpush1.msra.mxu0 0.0
        %825 = vmatprep.subr.mxu0 0.0
        %826 = vmatpush1.msra.mxu0 0.0
        %827 = vmatprep.subr.mxu0 0.0
        %828 = vmatpush1.msra.mxu0 0.0
        %829 = vmatprep.subr.mxu0 0.0
        %830 = vmatpush1.msra.mxu0 0.0
        %831 = vmatprep.subr.mxu0 0.0
        %832 = vmatpush1.msra.mxu0 0.0
        %833 = vmatprep.subr.mxu0 0.0
        %834 = vmatpush1.msra.mxu0 0.0
        %835 = vmatprep.mubr.f32.mxu0 0.0
        %836 = vmatmul.mubr.f32.gmra.mrb[0].mxu0 %v769
        %v837 = vpop.f32.mrb[0].mxu0
        %v838 = vadd.f32 0.0, %v837
        %v839 = vpop.f32.mrb[0].mxu0
        %840 = vdwg.mxu0
        %v845 = vrot.slane %v744, 7
        %v846 = vsel %vm362, %v845, %v743
        %v847 = vrot.slane %v745, 6
        %v848 = vsel %vm365, %v847, %v846
        %v849 = vrot.slane %v746, 5
        %v850 = vsel %vm368, %v849, %v848
        %v851 = vsel %vm370, %v850, 0
        %853 = vmatprep.subr.mxu0 0.0
        %854 = vmatpush1.msra.mxu0 %v280
        %855 = vmatprep.subr.mxu0 0.0
        %856 = vmatpush1.msra.mxu0 %v281
        %857 = vmatprep.subr.mxu0 0.0
        %858 = vmatpush1.msra.mxu0 0.0
        %859 = vmatprep.subr.mxu0 0.0
        %860 = vmatpush1.msra.mxu0 0.0
        %861 = vmatprep.subr.mxu0 0.0
        %862 = vmatpush1.msra.mxu0 0.0
        %863 = vmatprep.subr.mxu0 0.0
        %864 = vmatpush1.msra.mxu0 0.0
        %865 = vmatprep.subr.mxu0 0.0
        %866 = vmatpush1.msra.mxu0 0.0
        %867 = vmatprep.subr.mxu0 0.0
        %868 = vmatpush1.msra.mxu0 0.0
        %869 = vmatprep.subr.mxu0 0.0
        %870 = vmatpush1.msra.mxu0 0.0
        %871 = vmatprep.subr.mxu0 0.0
        %872 = vmatpush1.msra.mxu0 0.0
        %873 = vmatprep.subr.mxu0 0.0
        %874 = vmatpush1.msra.mxu0 0.0
        %875 = vmatprep.subr.mxu0 0.0
        %876 = vmatpush1.msra.mxu0 0.0
        %877 = vmatprep.subr.mxu0 0.0
        %878 = vmatpush1.msra.mxu0 0.0
        %879 = vmatprep.subr.mxu0 0.0
        %880 = vmatpush1.msra.mxu0 0.0
        %881 = vmatprep.subr.mxu0 0.0
        %882 = vmatpush1.msra.mxu0 0.0
        %883 = vmatprep.subr.mxu0 0.0
        %884 = vmatpush1.msra.mxu0 0.0
        %885 = vmatprep.subr.mxu0 0.0
        %886 = vmatpush1.msra.mxu0 0.0
        %887 = vmatprep.subr.mxu0 0.0
        %888 = vmatpush1.msra.mxu0 0.0
        %889 = vmatprep.subr.mxu0 0.0
        %890 = vmatpush1.msra.mxu0 0.0
        %891 = vmatprep.subr.mxu0 0.0
        %892 = vmatpush1.msra.mxu0 0.0
        %893 = vmatprep.subr.mxu0 0.0
        %894 = vmatpush1.msra.mxu0 0.0
        %895 = vmatprep.subr.mxu0 0.0
        %896 = vmatpush1.msra.mxu0 0.0
        %897 = vmatprep.subr.mxu0 0.0
        %898 = vmatpush1.msra.mxu0 0.0
        %899 = vmatprep.subr.mxu0 0.0
        %900 = vmatpush1.msra.mxu0 0.0
        %901 = vmatprep.subr.mxu0 0.0
        %902 = vmatpush1.msra.mxu0 0.0
        %903 = vmatprep.subr.mxu0 0.0
        %904 = vmatpush1.msra.mxu0 0.0
        %905 = vmatprep.subr.mxu0 0.0
        %906 = vmatpush1.msra.mxu0 0.0
        %907 = vmatprep.subr.mxu0 0.0
        %908 = vmatpush1.msra.mxu0 0.0
        %909 = vmatprep.subr.mxu0 0.0
        %910 = vmatpush1.msra.mxu0 0.0
        %911 = vmatprep.subr.mxu0 0.0
        %912 = vmatpush1.msra.mxu0 0.0
        %913 = vmatprep.subr.mxu0 0.0
        %914 = vmatpush1.msra.mxu0 0.0
        %915 = vmatprep.subr.mxu0 0.0
        %916 = vmatpush1.msra.mxu0 0.0
        %917 = vmatprep.mubr.f32.mxu0 0.0
        %918 = vmatmul.mubr.f32.gmra.mrb[0].mxu0 %v851
        %v919 = vpop.f32.mrb[0].mxu0
        %v920 = vadd.f32 %v838, %v919
        %v921 = vpop.f32.mrb[0].mxu0
        %922 = vdwg.mxu0
        %v923 = vadd.f32 %v920, %v527
        %v924 = vld [vmem:[%s234 + $0x6] sm:$0x1]
        %v925 = vld [vmem:[%s234 + $0x16] sm:$0x1]
        %v926 = vld [vmem:[%s234 + $0x26] sm:$0x1]
        %v927 = vld [vmem:[%s234 + $0x36] sm:$0x1]
        %v928 = vld [vmem:[%s234 + $0x7] sm:$0x1]
        %v929 = vld [vmem:[%s234 + $0x17] sm:$0x1]
        %v930 = vld [vmem:[%s234 + $0x27] sm:$0x1]
        %v931 = vld [vmem:[%s234 + $0x37] sm:$0x1]
        %v932 = vmul.f32 %v924, %v295
        %v933 = vmul.f32 %v925, %v296
        %v934 = vmul.f32 %v926, %v297
        %v935 = vmul.f32 %v927, %v298
        %v936 = vmul.f32 %v928, %v309
        %v937 = vmul.f32 %v929, %v310
        %v938 = vmul.f32 %v930, %v311
        %v939 = vmul.f32 %v931, %v312
        %v940 = vadd.f32 %v932, %v936
        %v941 = vadd.f32 %v933, %v937
        %v942 = vadd.f32 %v934, %v938
        %v943 = vadd.f32 %v935, %v939
        %v944 = vmul.f32 %v924, %v327
        %v945 = vmul.f32 %v925, %v328
        %v946 = vmul.f32 %v926, %v329
        %v947 = vmul.f32 %v927, %v330
        %v948 = vmul.f32 %v928, %v341
        %v949 = vmul.f32 %v929, %v342
        %v950 = vmul.f32 %v930, %v343
        %v951 = vmul.f32 %v931, %v344
        %v952 = vadd.f32 %v944, %v948
        %v953 = vadd.f32 %v945, %v949
        %v954 = vadd.f32 %v946, %v950
        %v955 = vadd.f32 %v947, %v951
        %v960 = vrot.slane %v953, 7
        %v961 = vsel %vm362, %v960, %v952
        %v962 = vrot.slane %v954, 6
        %v963 = vsel %vm365, %v962, %v961
        %v964 = vrot.slane %v955, 5
        %v965 = vsel %vm368, %v964, %v963
        %v966 = vsel %vm370, %v965, 0
        %968 = vmatprep.subr.mxu0 0.0
        %969 = vmatpush1.msra.mxu0 %v282
        %970 = vmatprep.subr.mxu0 0.0
        %971 = vmatpush1.msra.mxu0 %v283
        %972 = vmatprep.subr.mxu0 0.0
        %973 = vmatpush1.msra.mxu0 0.0
        %974 = vmatprep.subr.mxu0 0.0
        %975 = vmatpush1.msra.mxu0 0.0
        %976 = vmatprep.subr.mxu0 0.0
        %977 = vmatpush1.msra.mxu0 0.0
        %978 = vmatprep.subr.mxu0 0.0
        %979 = vmatpush1.msra.mxu0 0.0
        %980 = vmatprep.subr.mxu0 0.0
        %981 = vmatpush1.msra.mxu0 0.0
        %982 = vmatprep.subr.mxu0 0.0
        %983 = vmatpush1.msra.mxu0 0.0
        %984 = vmatprep.subr.mxu0 0.0
        %985 = vmatpush1.msra.mxu0 0.0
        %986 = vmatprep.subr.mxu0 0.0
        %987 = vmatpush1.msra.mxu0 0.0
        %988 = vmatprep.subr.mxu0 0.0
        %989 = vmatpush1.msra.mxu0 0.0
        %990 = vmatprep.subr.mxu0 0.0
        %991 = vmatpush1.msra.mxu0 0.0
        %992 = vmatprep.subr.mxu0 0.0
        %993 = vmatpush1.msra.mxu0 0.0
        %994 = vmatprep.subr.mxu0 0.0
        %995 = vmatpush1.msra.mxu0 0.0
        %996 = vmatprep.subr.mxu0 0.0
        %997 = vmatpush1.msra.mxu0 0.0
        %998 = vmatprep.subr.mxu0 0.0
        %999 = vmatpush1.msra.mxu0 0.0
        %1000 = vmatprep.subr.mxu0 0.0
        %1001 = vmatpush1.msra.mxu0 0.0
        %1002 = vmatprep.subr.mxu0 0.0
        %1003 = vmatpush1.msra.mxu0 0.0
        %1004 = vmatprep.subr.mxu0 0.0
        %1005 = vmatpush1.msra.mxu0 0.0
        %1006 = vmatprep.subr.mxu0 0.0
        %1007 = vmatpush1.msra.mxu0 0.0
        %1008 = vmatprep.subr.mxu0 0.0
        %1009 = vmatpush1.msra.mxu0 0.0
        %1010 = vmatprep.subr.mxu0 0.0
        %1011 = vmatpush1.msra.mxu0 0.0
        %1012 = vmatprep.subr.mxu0 0.0
        %1013 = vmatpush1.msra.mxu0 0.0
        %1014 = vmatprep.subr.mxu0 0.0
        %1015 = vmatpush1.msra.mxu0 0.0
        %1016 = vmatprep.subr.mxu0 0.0
        %1017 = vmatpush1.msra.mxu0 0.0
        %1018 = vmatprep.subr.mxu0 0.0
        %1019 = vmatpush1.msra.mxu0 0.0
        %1020 = vmatprep.subr.mxu0 0.0
        %1021 = vmatpush1.msra.mxu0 0.0
        %1022 = vmatprep.subr.mxu0 0.0
        %1023 = vmatpush1.msra.mxu0 0.0
        %1024 = vmatprep.subr.mxu0 0.0
        %1025 = vmatpush1.msra.mxu0 0.0
        %1026 = vmatprep.subr.mxu0 0.0
        %1027 = vmatpush1.msra.mxu0 0.0
        %1028 = vmatprep.subr.mxu0 0.0
        %1029 = vmatpush1.msra.mxu0 0.0
        %1030 = vmatprep.subr.mxu0 0.0
        %1031 = vmatpush1.msra.mxu0 0.0
        %1032 = vmatprep.mubr.f32.mxu0 0.0
        %1033 = vmatmul.mubr.f32.gmra.mrb[0].mxu0 %v966
        %v1034 = vpop.f32.mrb[0].mxu0
        %v1035 = vadd.f32 0.0, %v1034
        %v1036 = vpop.f32.mrb[0].mxu0
        %1037 = vdwg.mxu0
        %v1042 = vrot.slane %v941, 7
        %v1043 = vsel %vm362, %v1042, %v940
        %v1044 = vrot.slane %v942, 6
        %v1045 = vsel %vm365, %v1044, %v1043
        %v1046 = vrot.slane %v943, 5
        %v1047 = vsel %vm368, %v1046, %v1045
        %v1048 = vsel %vm370, %v1047, 0
        %1050 = vmatprep.subr.mxu0 0.0
        %1051 = vmatpush1.msra.mxu0 %v280
        %1052 = vmatprep.subr.mxu0 0.0
        %1053 = vmatpush1.msra.mxu0 %v281
        %1054 = vmatprep.subr.mxu0 0.0
        %1055 = vmatpush1.msra.mxu0 0.0
        %1056 = vmatprep.subr.mxu0 0.0
        %1057 = vmatpush1.msra.mxu0 0.0
        %1058 = vmatprep.subr.mxu0 0.0
        %1059 = vmatpush1.msra.mxu0 0.0
        %1060 = vmatprep.subr.mxu0 0.0
        %1061 = vmatpush1.msra.mxu0 0.0
        %1062 = vmatprep.subr.mxu0 0.0
        %1063 = vmatpush1.msra.mxu0 0.0
        %1064 = vmatprep.subr.mxu0 0.0
        %1065 = vmatpush1.msra.mxu0 0.0
        %1066 = vmatprep.subr.mxu0 0.0
        %1067 = vmatpush1.msra.mxu0 0.0
        %1068 = vmatprep.subr.mxu0 0.0
        %1069 = vmatpush1.msra.mxu0 0.0
        %1070 = vmatprep.subr.mxu0 0.0
        %1071 = vmatpush1.msra.mxu0 0.0
        %1072 = vmatprep.subr.mxu0 0.0
        %1073 = vmatpush1.msra.mxu0 0.0
        %1074 = vmatprep.subr.mxu0 0.0
        %1075 = vmatpush1.msra.mxu0 0.0
        %1076 = vmatprep.subr.mxu0 0.0
        %1077 = vmatpush1.msra.mxu0 0.0
        %1078 = vmatprep.subr.mxu0 0.0
        %1079 = vmatpush1.msra.mxu0 0.0
        %1080 = vmatprep.subr.mxu0 0.0
        %1081 = vmatpush1.msra.mxu0 0.0
        %1082 = vmatprep.subr.mxu0 0.0
        %1083 = vmatpush1.msra.mxu0 0.0
        %1084 = vmatprep.subr.mxu0 0.0
        %1085 = vmatpush1.msra.mxu0 0.0
        %1086 = vmatprep.subr.mxu0 0.0
        %1087 = vmatpush1.msra.mxu0 0.0
        %1088 = vmatprep.subr.mxu0 0.0
        %1089 = vmatpush1.msra.mxu0 0.0
        %1090 = vmatprep.subr.mxu0 0.0
        %1091 = vmatpush1.msra.mxu0 0.0
        %1092 = vmatprep.subr.mxu0 0.0
        %1093 = vmatpush1.msra.mxu0 0.0
        %1094 = vmatprep.subr.mxu0 0.0
        %1095 = vmatpush1.msra.mxu0 0.0
        %1096 = vmatprep.subr.mxu0 0.0
        %1097 = vmatpush1.msra.mxu0 0.0
        %1098 = vmatprep.subr.mxu0 0.0
        %1099 = vmatpush1.msra.mxu0 0.0
        %1100 = vmatprep.subr.mxu0 0.0
        %1101 = vmatpush1.msra.mxu0 0.0
        %1102 = vmatprep.subr.mxu0 0.0
        %1103 = vmatpush1.msra.mxu0 0.0
        %1104 = vmatprep.subr.mxu0 0.0
        %1105 = vmatpush1.msra.mxu0 0.0
        %1106 = vmatprep.subr.mxu0 0.0
        %1107 = vmatpush1.msra.mxu0 0.0
        %1108 = vmatprep.subr.mxu0 0.0
        %1109 = vmatpush1.msra.mxu0 0.0
        %1110 = vmatprep.subr.mxu0 0.0
        %1111 = vmatpush1.msra.mxu0 0.0
        %1112 = vmatprep.subr.mxu0 0.0
        %1113 = vmatpush1.msra.mxu0 0.0
        %1114 = vmatprep.mubr.f32.mxu0 0.0
        %1115 = vmatmul.mubr.f32.gmra.mrb[0].mxu0 %v1048
        %v1116 = vpop.f32.mrb[0].mxu0
        %v1117 = vadd.f32 %v1035, %v1116
        %v1118 = vpop.f32.mrb[0].mxu0
        %1119 = vdwg.mxu0
        %v1120 = vadd.f32 %v1117, %v527
        %v1121 = vld [vmem:[%s234 + $0x8] sm:$0x1]
        %v1122 = vld [vmem:[%s234 + $0x18] sm:$0x1]
        %v1123 = vld [vmem:[%s234 + $0x28] sm:$0x1]
        %v1124 = vld [vmem:[%s234 + $0x38] sm:$0x1]
        %v1125 = vld [vmem:[%s234 + $0x9] sm:$0x1]
        %v1126 = vld [vmem:[%s234 + $0x19] sm:$0x1]
        %v1127 = vld [vmem:[%s234 + $0x29] sm:$0x1]
        %v1128 = vld [vmem:[%s234 + $0x39] sm:$0x1]
        %v1129 = vmul.f32 %v1121, %v295
        %v1130 = vmul.f32 %v1122, %v296
        %v1131 = vmul.f32 %v1123, %v297
        %v1132 = vmul.f32 %v1124, %v298
        %v1133 = vmul.f32 %v1125, %v309
        %v1134 = vmul.f32 %v1126, %v310
        %v1135 = vmul.f32 %v1127, %v311
        %v1136 = vmul.f32 %v1128, %v312
        %v1137 = vadd.f32 %v1129, %v1133
        %v1138 = vadd.f32 %v1130, %v1134
        %v1139 = vadd.f32 %v1131, %v1135
        %v1140 = vadd.f32 %v1132, %v1136
        %v1141 = vmul.f32 %v1121, %v327
        %v1142 = vmul.f32 %v1122, %v328
        %v1143 = vmul.f32 %v1123, %v329
        %v1144 = vmul.f32 %v1124, %v330
        %v1145 = vmul.f32 %v1125, %v341
        %v1146 = vmul.f32 %v1126, %v342
        %v1147 = vmul.f32 %v1127, %v343
        %v1148 = vmul.f32 %v1128, %v344
        %v1149 = vadd.f32 %v1141, %v1145
        %v1150 = vadd.f32 %v1142, %v1146
        %v1151 = vadd.f32 %v1143, %v1147
        %v1152 = vadd.f32 %v1144, %v1148
        %v1157 = vrot.slane %v1150, 7
        %v1158 = vsel %vm362, %v1157, %v1149
        %v1159 = vrot.slane %v1151, 6
        %v1160 = vsel %vm365, %v1159, %v1158
        %v1161 = vrot.slane %v1152, 5
        %v1162 = vsel %vm368, %v1161, %v1160
        %v1163 = vsel %vm370, %v1162, 0
        %1165 = vmatprep.subr.mxu0 0.0
        %1166 = vmatpush1.msra.mxu0 %v282
        %1167 = vmatprep.subr.mxu0 0.0
        %1168 = vmatpush1.msra.mxu0 %v283
        %1169 = vmatprep.subr.mxu0 0.0
        %1170 = vmatpush1.msra.mxu0 0.0
        %1171 = vmatprep.subr.mxu0 0.0
        %1172 = vmatpush1.msra.mxu0 0.0
        %1173 = vmatprep.subr.mxu0 0.0
        %1174 = vmatpush1.msra.mxu0 0.0
        %1175 = vmatprep.subr.mxu0 0.0
        %1176 = vmatpush1.msra.mxu0 0.0
        %1177 = vmatprep.subr.mxu0 0.0
        %1178 = vmatpush1.msra.mxu0 0.0
        %1179 = vmatprep.subr.mxu0 0.0
        %1180 = vmatpush1.msra.mxu0 0.0
        %1181 = vmatprep.subr.mxu0 0.0
        %1182 = vmatpush1.msra.mxu0 0.0
        %1183 = vmatprep.subr.mxu0 0.0
        %1184 = vmatpush1.msra.mxu0 0.0
        %1185 = vmatprep.subr.mxu0 0.0
        %1186 = vmatpush1.msra.mxu0 0.0
        %1187 = vmatprep.subr.mxu0 0.0
        %1188 = vmatpush1.msra.mxu0 0.0
        %1189 = vmatprep.subr.mxu0 0.0
        %1190 = vmatpush1.msra.mxu0 0.0
        %1191 = vmatprep.subr.mxu0 0.0
        %1192 = vmatpush1.msra.mxu0 0.0
        %1193 = vmatprep.subr.mxu0 0.0
        %1194 = vmatpush1.msra.mxu0 0.0
        %1195 = vmatprep.subr.mxu0 0.0
        %1196 = vmatpush1.msra.mxu0 0.0
        %1197 = vmatprep.subr.mxu0 0.0
        %1198 = vmatpush1.msra.mxu0 0.0
        %1199 = vmatprep.subr.mxu0 0.0
        %1200 = vmatpush1.msra.mxu0 0.0
        %1201 = vmatprep.subr.mxu0 0.0
        %1202 = vmatpush1.msra.mxu0 0.0
        %1203 = vmatprep.subr.mxu0 0.0
        %1204 = vmatpush1.msra.mxu0 0.0
        %1205 = vmatprep.subr.mxu0 0.0
        %1206 = vmatpush1.msra.mxu0 0.0
        %1207 = vmatprep.subr.mxu0 0.0
        %1208 = vmatpush1.msra.mxu0 0.0
        %1209 = vmatprep.subr.mxu0 0.0
        %1210 = vmatpush1.msra.mxu0 0.0
        %1211 = vmatprep.subr.mxu0 0.0
        %1212 = vmatpush1.msra.mxu0 0.0
        %1213 = vmatprep.subr.mxu0 0.0
        %1214 = vmatpush1.msra.mxu0 0.0
        %1215 = vmatprep.subr.mxu0 0.0
        %1216 = vmatpush1.msra.mxu0 0.0
        %1217 = vmatprep.subr.mxu0 0.0
        %1218 = vmatpush1.msra.mxu0 0.0
        %1219 = vmatprep.subr.mxu0 0.0
        %1220 = vmatpush1.msra.mxu0 0.0
        %1221 = vmatprep.subr.mxu0 0.0
        %1222 = vmatpush1.msra.mxu0 0.0
        %1223 = vmatprep.subr.mxu0 0.0
        %1224 = vmatpush1.msra.mxu0 0.0
        %1225 = vmatprep.subr.mxu0 0.0
        %1226 = vmatpush1.msra.mxu0 0.0
        %1227 = vmatprep.subr.mxu0 0.0
        %1228 = vmatpush1.msra.mxu0 0.0
        %1229 = vmatprep.mubr.f32.mxu0 0.0
        %1230 = vmatmul.mubr.f32.gmra.mrb[0].mxu0 %v1163
        %v1231 = vpop.f32.mrb[0].mxu0
        %v1232 = vadd.f32 0.0, %v1231
        %v1233 = vpop.f32.mrb[0].mxu0
        %1234 = vdwg.mxu0
        %v1239 = vrot.slane %v1138, 7
        %v1240 = vsel %vm362, %v1239, %v1137
        %v1241 = vrot.slane %v1139, 6
        %v1242 = vsel %vm365, %v1241, %v1240
        %v1243 = vrot.slane %v1140, 5
        %v1244 = vsel %vm368, %v1243, %v1242
        %v1245 = vsel %vm370, %v1244, 0
        %1247 = vmatprep.subr.mxu0 0.0
        %1248 = vmatpush1.msra.mxu0 %v280
        %1249 = vmatprep.subr.mxu0 0.0
        %1250 = vmatpush1.msra.mxu0 %v281
        %1251 = vmatprep.subr.mxu0 0.0
        %1252 = vmatpush1.msra.mxu0 0.0
        %1253 = vmatprep.subr.mxu0 0.0
        %1254 = vmatpush1.msra.mxu0 0.0
        %1255 = vmatprep.subr.mxu0 0.0
        %1256 = vmatpush1.msra.mxu0 0.0
        %1257 = vmatprep.subr.mxu0 0.0
        %1258 = vmatpush1.msra.mxu0 0.0
        %1259 = vmatprep.subr.mxu0 0.0
        %1260 = vmatpush1.msra.mxu0 0.0
        %1261 = vmatprep.subr.mxu0 0.0
        %1262 = vmatpush1.msra.mxu0 0.0
        %1263 = vmatprep.subr.mxu0 0.0
        %1264 = vmatpush1.msra.mxu0 0.0
        %1265 = vmatprep.subr.mxu0 0.0
        %1266 = vmatpush1.msra.mxu0 0.0
        %1267 = vmatprep.subr.mxu0 0.0
        %1268 = vmatpush1.msra.mxu0 0.0
        %1269 = vmatprep.subr.mxu0 0.0
        %1270 = vmatpush1.msra.mxu0 0.0
        %1271 = vmatprep.subr.mxu0 0.0
        %1272 = vmatpush1.msra.mxu0 0.0
        %1273 = vmatprep.subr.mxu0 0.0
        %1274 = vmatpush1.msra.mxu0 0.0
        %1275 = vmatprep.subr.mxu0 0.0
        %1276 = vmatpush1.msra.mxu0 0.0
        %1277 = vmatprep.subr.mxu0 0.0
        %1278 = vmatpush1.msra.mxu0 0.0
        %1279 = vmatprep.subr.mxu0 0.0
        %1280 = vmatpush1.msra.mxu0 0.0
        %1281 = vmatprep.subr.mxu0 0.0
        %1282 = vmatpush1.msra.mxu0 0.0
        %1283 = vmatprep.subr.mxu0 0.0
        %1284 = vmatpush1.msra.mxu0 0.0
        %1285 = vmatprep.subr.mxu0 0.0
        %1286 = vmatpush1.msra.mxu0 0.0
        %1287 = vmatprep.subr.mxu0 0.0
        %1288 = vmatpush1.msra.mxu0 0.0
        %1289 = vmatprep.subr.mxu0 0.0
        %1290 = vmatpush1.msra.mxu0 0.0
        %1291 = vmatprep.subr.mxu0 0.0
        %1292 = vmatpush1.msra.mxu0 0.0
        %1293 = vmatprep.subr.mxu0 0.0
        %1294 = vmatpush1.msra.mxu0 0.0
        %1295 = vmatprep.subr.mxu0 0.0
        %1296 = vmatpush1.msra.mxu0 0.0
        %1297 = vmatprep.subr.mxu0 0.0
        %1298 = vmatpush1.msra.mxu0 0.0
        %1299 = vmatprep.subr.mxu0 0.0
        %1300 = vmatpush1.msra.mxu0 0.0
        %1301 = vmatprep.subr.mxu0 0.0
        %1302 = vmatpush1.msra.mxu0 0.0
        %1303 = vmatprep.subr.mxu0 0.0
        %1304 = vmatpush1.msra.mxu0 0.0
        %1305 = vmatprep.subr.mxu0 0.0
        %1306 = vmatpush1.msra.mxu0 0.0
        %1307 = vmatprep.subr.mxu0 0.0
        %1308 = vmatpush1.msra.mxu0 0.0
        %1309 = vmatprep.subr.mxu0 0.0
        %1310 = vmatpush1.msra.mxu0 0.0
        %1311 = vmatprep.mubr.f32.mxu0 0.0
        %1312 = vmatmul.mubr.f32.gmra.mrb[0].mxu0 %v1245
        %v1313 = vpop.f32.mrb[0].mxu0
        %v1314 = vadd.f32 %v1232, %v1313
        %v1315 = vpop.f32.mrb[0].mxu0
        %1316 = vdwg.mxu0
        %v1317 = vadd.f32 %v1314, %v527
        %v1318 = vld [vmem:[%s234 + $0xa] sm:$0x1]
        %v1319 = vld [vmem:[%s234 + $0x1a] sm:$0x1]
        %v1320 = vld [vmem:[%s234 + $0x2a] sm:$0x1]
        %v1321 = vld [vmem:[%s234 + $0x3a] sm:$0x1]
        %v1322 = vld [vmem:[%s234 + $0xb] sm:$0x1]
        %v1323 = vld [vmem:[%s234 + $0x1b] sm:$0x1]
        %v1324 = vld [vmem:[%s234 + $0x2b] sm:$0x1]
        %v1325 = vld [vmem:[%s234 + $0x3b] sm:$0x1]
        %v1326 = vmul.f32 %v1318, %v295
        %v1327 = vmul.f32 %v1319, %v296
        %v1328 = vmul.f32 %v1320, %v297
        %v1329 = vmul.f32 %v1321, %v298
        %v1330 = vmul.f32 %v1322, %v309
        %v1331 = vmul.f32 %v1323, %v310
        %v1332 = vmul.f32 %v1324, %v311
        %v1333 = vmul.f32 %v1325, %v312
        %v1334 = vadd.f32 %v1326, %v1330
        %v1335 = vadd.f32 %v1327, %v1331
        %v1336 = vadd.f32 %v1328, %v1332
        %v1337 = vadd.f32 %v1329, %v1333
        %v1338 = vmul.f32 %v1318, %v327
        %v1339 = vmul.f32 %v1319, %v328
        %v1340 = vmul.f32 %v1320, %v329
        %v1341 = vmul.f32 %v1321, %v330
        %v1342 = vmul.f32 %v1322, %v341
        %v1343 = vmul.f32 %v1323, %v342
        %v1344 = vmul.f32 %v1324, %v343
        %v1345 = vmul.f32 %v1325, %v344
        %v1346 = vadd.f32 %v1338, %v1342
        %v1347 = vadd.f32 %v1339, %v1343
        %v1348 = vadd.f32 %v1340, %v1344
        %v1349 = vadd.f32 %v1341, %v1345
        %v1354 = vrot.slane %v1347, 7
        %v1355 = vsel %vm362, %v1354, %v1346
        %v1356 = vrot.slane %v1348, 6
        %v1357 = vsel %vm365, %v1356, %v1355
        %v1358 = vrot.slane %v1349, 5
        %v1359 = vsel %vm368, %v1358, %v1357
        %v1360 = vsel %vm370, %v1359, 0
        %1362 = vmatprep.subr.mxu0 0.0
        %1363 = vmatpush1.msra.mxu0 %v282
        %1364 = vmatprep.subr.mxu0 0.0
        %1365 = vmatpush1.msra.mxu0 %v283
        %1366 = vmatprep.subr.mxu0 0.0
        %1367 = vmatpush1.msra.mxu0 0.0
        %1368 = vmatprep.subr.mxu0 0.0
        %1369 = vmatpush1.msra.mxu0 0.0
        %1370 = vmatprep.subr.mxu0 0.0
        %1371 = vmatpush1.msra.mxu0 0.0
        %1372 = vmatprep.subr.mxu0 0.0
        %1373 = vmatpush1.msra.mxu0 0.0
        %1374 = vmatprep.subr.mxu0 0.0
        %1375 = vmatpush1.msra.mxu0 0.0
        %1376 = vmatprep.subr.mxu0 0.0
        %1377 = vmatpush1.msra.mxu0 0.0
        %1378 = vmatprep.subr.mxu0 0.0
        %1379 = vmatpush1.msra.mxu0 0.0
        %1380 = vmatprep.subr.mxu0 0.0
        %1381 = vmatpush1.msra.mxu0 0.0
        %1382 = vmatprep.subr.mxu0 0.0
        %1383 = vmatpush1.msra.mxu0 0.0
        %1384 = vmatprep.subr.mxu0 0.0
        %1385 = vmatpush1.msra.mxu0 0.0
        %1386 = vmatprep.subr.mxu0 0.0
        %1387 = vmatpush1.msra.mxu0 0.0
        %1388 = vmatprep.subr.mxu0 0.0
        %1389 = vmatpush1.msra.mxu0 0.0
        %1390 = vmatprep.subr.mxu0 0.0
        %1391 = vmatpush1.msra.mxu0 0.0
        %1392 = vmatprep.subr.mxu0 0.0
        %1393 = vmatpush1.msra.mxu0 0.0
        %1394 = vmatprep.subr.mxu0 0.0
        %1395 = vmatpush1.msra.mxu0 0.0
        %1396 = vmatprep.subr.mxu0 0.0
        %1397 = vmatpush1.msra.mxu0 0.0
        %1398 = vmatprep.subr.mxu0 0.0
        %1399 = vmatpush1.msra.mxu0 0.0
        %1400 = vmatprep.subr.mxu0 0.0
        %1401 = vmatpush1.msra.mxu0 0.0
        %1402 = vmatprep.subr.mxu0 0.0
        %1403 = vmatpush1.msra.mxu0 0.0
        %1404 = vmatprep.subr.mxu0 0.0
        %1405 = vmatpush1.msra.mxu0 0.0
        %1406 = vmatprep.subr.mxu0 0.0
        %1407 = vmatpush1.msra.mxu0 0.0
        %1408 = vmatprep.subr.mxu0 0.0
        %1409 = vmatpush1.msra.mxu0 0.0
        %1410 = vmatprep.subr.mxu0 0.0
        %1411 = vmatpush1.msra.mxu0 0.0
        %1412 = vmatprep.subr.mxu0 0.0
        %1413 = vmatpush1.msra.mxu0 0.0
        %1414 = vmatprep.subr.mxu0 0.0
        %1415 = vmatpush1.msra.mxu0 0.0
        %1416 = vmatprep.subr.mxu0 0.0
        %1417 = vmatpush1.msra.mxu0 0.0
        %1418 = vmatprep.subr.mxu0 0.0
        %1419 = vmatpush1.msra.mxu0 0.0
        %1420 = vmatprep.subr.mxu0 0.0
        %1421 = vmatpush1.msra.mxu0 0.0
        %1422 = vmatprep.subr.mxu0 0.0
        %1423 = vmatpush1.msra.mxu0 0.0
        %1424 = vmatprep.subr.mxu0 0.0
        %1425 = vmatpush1.msra.mxu0 0.0
        %1426 = vmatprep.mubr.f32.mxu0 0.0
        %1427 = vmatmul.mubr.f32.gmra.mrb[0].mxu0 %v1360
        %v1428 = vpop.f32.mrb[0].mxu0
        %v1429 = vadd.f32 0.0, %v1428
        %v1430 = vpop.f32.mrb[0].mxu0
        %1431 = vdwg.mxu0
        %v1436 = vrot.slane %v1335, 7
        %v1437 = vsel %vm362, %v1436, %v1334
        %v1438 = vrot.slane %v1336, 6
        %v1439 = vsel %vm365, %v1438, %v1437
        %v1440 = vrot.slane %v1337, 5
        %v1441 = vsel %vm368, %v1440, %v1439
        %v1442 = vsel %vm370, %v1441, 0
        %1444 = vmatprep.subr.mxu0 0.0
        %1445 = vmatpush1.msra.mxu0 %v280
        %1446 = vmatprep.subr.mxu0 0.0
        %1447 = vmatpush1.msra.mxu0 %v281
        %1448 = vmatprep.subr.mxu0 0.0
        %1449 = vmatpush1.msra.mxu0 0.0
        %1450 = vmatprep.subr.mxu0 0.0
        %1451 = vmatpush1.msra.mxu0 0.0
        %1452 = vmatprep.subr.mxu0 0.0
        %1453 = vmatpush1.msra.mxu0 0.0
        %1454 = vmatprep.subr.mxu0 0.0
        %1455 = vmatpush1.msra.mxu0 0.0
        %1456 = vmatprep.subr.mxu0 0.0
        %1457 = vmatpush1.msra.mxu0 0.0
        %1458 = vmatprep.subr.mxu0 0.0
        %1459 = vmatpush1.msra.mxu0 0.0
        %1460 = vmatprep.subr.mxu0 0.0
        %1461 = vmatpush1.msra.mxu0 0.0
        %1462 = vmatprep.subr.mxu0 0.0
        %1463 = vmatpush1.msra.mxu0 0.0
        %1464 = vmatprep.subr.mxu0 0.0
        %1465 = vmatpush1.msra.mxu0 0.0
        %1466 = vmatprep.subr.mxu0 0.0
        %1467 = vmatpush1.msra.mxu0 0.0
        %1468 = vmatprep.subr.mxu0 0.0
        %1469 = vmatpush1.msra.mxu0 0.0
        %1470 = vmatprep.subr.mxu0 0.0
        %1471 = vmatpush1.msra.mxu0 0.0
        %1472 = vmatprep.subr.mxu0 0.0
        %1473 = vmatpush1.msra.mxu0 0.0
        %1474 = vmatprep.subr.mxu0 0.0
        %1475 = vmatpush1.msra.mxu0 0.0
        %1476 = vmatprep.subr.mxu0 0.0
        %1477 = vmatpush1.msra.mxu0 0.0
        %1478 = vmatprep.subr.mxu0 0.0
        %1479 = vmatpush1.msra.mxu0 0.0
        %1480 = vmatprep.subr.mxu0 0.0
        %1481 = vmatpush1.msra.mxu0 0.0
        %1482 = vmatprep.subr.mxu0 0.0
        %1483 = vmatpush1.msra.mxu0 0.0
        %1484 = vmatprep.subr.mxu0 0.0
        %1485 = vmatpush1.msra.mxu0 0.0
        %1486 = vmatprep.subr.mxu0 0.0
        %1487 = vmatpush1.msra.mxu0 0.0
        %1488 = vmatprep.subr.mxu0 0.0
        %1489 = vmatpush1.msra.mxu0 0.0
        %1490 = vmatprep.subr.mxu0 0.0
        %1491 = vmatpush1.msra.mxu0 0.0
        %1492 = vmatprep.subr.mxu0 0.0
        %1493 = vmatpush1.msra.mxu0 0.0
        %1494 = vmatprep.subr.mxu0 0.0
        %1495 = vmatpush1.msra.mxu0 0.0
        %1496 = vmatprep.subr.mxu0 0.0
        %1497 = vmatpush1.msra.mxu0 0.0
        %1498 = vmatprep.subr.mxu0 0.0
        %1499 = vmatpush1.msra.mxu0 0.0
        %1500 = vmatprep.subr.mxu0 0.0
        %1501 = vmatpush1.msra.mxu0 0.0
        %1502 = vmatprep.subr.mxu0 0.0
        %1503 = vmatpush1.msra.mxu0 0.0
        %1504 = vmatprep.subr.mxu0 0.0
        %1505 = vmatpush1.msra.mxu0 0.0
        %1506 = vmatprep.subr.mxu0 0.0
        %1507 = vmatpush1.msra.mxu0 0.0
        %1508 = vmatprep.mubr.f32.mxu0 0.0
        %1509 = vmatmul.mubr.f32.gmra.mrb[0].mxu0 %v1442
        %v1510 = vpop.f32.mrb[0].mxu0
        %v1511 = vadd.f32 %v1429, %v1510
        %v1512 = vpop.f32.mrb[0].mxu0
        %1513 = vdwg.mxu0
        %v1514 = vadd.f32 %v1511, %v527
        %v1515 = vld [vmem:[%s234 + $0xc] sm:$0x1]
        %v1516 = vld [vmem:[%s234 + $0x1c] sm:$0x1]
        %v1517 = vld [vmem:[%s234 + $0x2c] sm:$0x1]
        %v1518 = vld [vmem:[%s234 + $0x3c] sm:$0x1]
        %v1519 = vld [vmem:[%s234 + $0xd] sm:$0x1]
        %v1520 = vld [vmem:[%s234 + $0x1d] sm:$0x1]
        %v1521 = vld [vmem:[%s234 + $0x2d] sm:$0x1]
        %v1522 = vld [vmem:[%s234 + $0x3d] sm:$0x1]
        %v1523 = vmul.f32 %v1515, %v295
        %v1524 = vmul.f32 %v1516, %v296
        %v1525 = vmul.f32 %v1517, %v297
        %v1526 = vmul.f32 %v1518, %v298
        %v1527 = vmul.f32 %v1519, %v309
        %v1528 = vmul.f32 %v1520, %v310
        %v1529 = vmul.f32 %v1521, %v311
        %v1530 = vmul.f32 %v1522, %v312
        %v1531 = vadd.f32 %v1523, %v1527
        %v1532 = vadd.f32 %v1524, %v1528
        %v1533 = vadd.f32 %v1525, %v1529
        %v1534 = vadd.f32 %v1526, %v1530
        %v1535 = vmul.f32 %v1515, %v327
        %v1536 = vmul.f32 %v1516, %v328
        %v1537 = vmul.f32 %v1517, %v329
        %v1538 = vmul.f32 %v1518, %v330
        %v1539 = vmul.f32 %v1519, %v341
        %v1540 = vmul.f32 %v1520, %v342
        %v1541 = vmul.f32 %v1521, %v343
        %v1542 = vmul.f32 %v1522, %v344
        %v1543 = vadd.f32 %v1535, %v1539
        %v1544 = vadd.f32 %v1536, %v1540
        %v1545 = vadd.f32 %v1537, %v1541
        %v1546 = vadd.f32 %v1538, %v1542
        %v1551 = vrot.slane %v1544, 7
        %v1552 = vsel %vm362, %v1551, %v1543
        %v1553 = vrot.slane %v1545, 6
        %v1554 = vsel %vm365, %v1553, %v1552
        %v1555 = vrot.slane %v1546, 5
        %v1556 = vsel %vm368, %v1555, %v1554
        %v1557 = vsel %vm370, %v1556, 0
        %1559 = vmatprep.subr.mxu0 0.0
        %1560 = vmatpush1.msra.mxu0 %v282
        %1561 = vmatprep.subr.mxu0 0.0
        %1562 = vmatpush1.msra.mxu0 %v283
        %1563 = vmatprep.subr.mxu0 0.0
        %1564 = vmatpush1.msra.mxu0 0.0
        %1565 = vmatprep.subr.mxu0 0.0
        %1566 = vmatpush1.msra.mxu0 0.0
        %1567 = vmatprep.subr.mxu0 0.0
        %1568 = vmatpush1.msra.mxu0 0.0
        %1569 = vmatprep.subr.mxu0 0.0
        %1570 = vmatpush1.msra.mxu0 0.0
        %1571 = vmatprep.subr.mxu0 0.0
        %1572 = vmatpush1.msra.mxu0 0.0
        %1573 = vmatprep.subr.mxu0 0.0
        %1574 = vmatpush1.msra.mxu0 0.0
        %1575 = vmatprep.subr.mxu0 0.0
        %1576 = vmatpush1.msra.mxu0 0.0
        %1577 = vmatprep.subr.mxu0 0.0
        %1578 = vmatpush1.msra.mxu0 0.0
        %1579 = vmatprep.subr.mxu0 0.0
        %1580 = vmatpush1.msra.mxu0 0.0
        %1581 = vmatprep.subr.mxu0 0.0
        %1582 = vmatpush1.msra.mxu0 0.0
        %1583 = vmatprep.subr.mxu0 0.0
        %1584 = vmatpush1.msra.mxu0 0.0
        %1585 = vmatprep.subr.mxu0 0.0
        %1586 = vmatpush1.msra.mxu0 0.0
        %1587 = vmatprep.subr.mxu0 0.0
        %1588 = vmatpush1.msra.mxu0 0.0
        %1589 = vmatprep.subr.mxu0 0.0
        %1590 = vmatpush1.msra.mxu0 0.0
        %1591 = vmatprep.subr.mxu0 0.0
        %1592 = vmatpush1.msra.mxu0 0.0
        %1593 = vmatprep.subr.mxu0 0.0
        %1594 = vmatpush1.msra.mxu0 0.0
        %1595 = vmatprep.subr.mxu0 0.0
        %1596 = vmatpush1.msra.mxu0 0.0
        %1597 = vmatprep.subr.mxu0 0.0
        %1598 = vmatpush1.msra.mxu0 0.0
        %1599 = vmatprep.subr.mxu0 0.0
        %1600 = vmatpush1.msra.mxu0 0.0
        %1601 = vmatprep.subr.mxu0 0.0
        %1602 = vmatpush1.msra.mxu0 0.0
        %1603 = vmatprep.subr.mxu0 0.0
        %1604 = vmatpush1.msra.mxu0 0.0
        %1605 = vmatprep.subr.mxu0 0.0
        %1606 = vmatpush1.msra.mxu0 0.0
        %1607 = vmatprep.subr.mxu0 0.0
        %1608 = vmatpush1.msra.mxu0 0.0
        %1609 = vmatprep.subr.mxu0 0.0
        %1610 = vmatpush1.msra.mxu0 0.0
        %1611 = vmatprep.subr.mxu0 0.0
        %1612 = vmatpush1.msra.mxu0 0.0
        %1613 = vmatprep.subr.mxu0 0.0
        %1614 = vmatpush1.msra.mxu0 0.0
        %1615 = vmatprep.subr.mxu0 0.0
        %1616 = vmatpush1.msra.mxu0 0.0
        %1617 = vmatprep.subr.mxu0 0.0
        %1618 = vmatpush1.msra.mxu0 0.0
        %1619 = vmatprep.subr.mxu0 0.0
        %1620 = vmatpush1.msra.mxu0 0.0
        %1621 = vmatprep.subr.mxu0 0.0
        %1622 = vmatpush1.msra.mxu0 0.0
        %1623 = vmatprep.mubr.f32.mxu0 0.0
        %1624 = vmatmul.mubr.f32.gmra.mrb[0].mxu0 %v1557
        %v1625 = vpop.f32.mrb[0].mxu0
        %v1626 = vadd.f32 0.0, %v1625
        %v1627 = vpop.f32.mrb[0].mxu0
        %1628 = vdwg.mxu0
        %v1633 = vrot.slane %v1532, 7
        %v1634 = vsel %vm362, %v1633, %v1531
        %v1635 = vrot.slane %v1533, 6
        %v1636 = vsel %vm365, %v1635, %v1634
        %v1637 = vrot.slane %v1534, 5
        %v1638 = vsel %vm368, %v1637, %v1636
        %v1639 = vsel %vm370, %v1638, 0
        %1641 = vmatprep.subr.mxu0 0.0
        %1642 = vmatpush1.msra.mxu0 %v280
        %1643 = vmatprep.subr.mxu0 0.0
        %1644 = vmatpush1.msra.mxu0 %v281
        %1645 = vmatprep.subr.mxu0 0.0
        %1646 = vmatpush1.msra.mxu0 0.0
        %1647 = vmatprep.subr.mxu0 0.0
        %1648 = vmatpush1.msra.mxu0 0.0
        %1649 = vmatprep.subr.mxu0 0.0
        %1650 = vmatpush1.msra.mxu0 0.0
        %1651 = vmatprep.subr.mxu0 0.0
        %1652 = vmatpush1.msra.mxu0 0.0
        %1653 = vmatprep.subr.mxu0 0.0
        %1654 = vmatpush1.msra.mxu0 0.0
        %1655 = vmatprep.subr.mxu0 0.0
        %1656 = vmatpush1.msra.mxu0 0.0
        %1657 = vmatprep.subr.mxu0 0.0
        %1658 = vmatpush1.msra.mxu0 0.0
        %1659 = vmatprep.subr.mxu0 0.0
        %1660 = vmatpush1.msra.mxu0 0.0
        %1661 = vmatprep.subr.mxu0 0.0
        %1662 = vmatpush1.msra.mxu0 0.0
        %1663 = vmatprep.subr.mxu0 0.0
        %1664 = vmatpush1.msra.mxu0 0.0
        %1665 = vmatprep.subr.mxu0 0.0
        %1666 = vmatpush1.msra.mxu0 0.0
        %1667 = vmatprep.subr.mxu0 0.0
        %1668 = vmatpush1.msra.mxu0 0.0
        %1669 = vmatprep.subr.mxu0 0.0
        %1670 = vmatpush1.msra.mxu0 0.0
        %1671 = vmatprep.subr.mxu0 0.0
        %1672 = vmatpush1.msra.mxu0 0.0
        %1673 = vmatprep.subr.mxu0 0.0
        %1674 = vmatpush1.msra.mxu0 0.0
        %1675 = vmatprep.subr.mxu0 0.0
        %1676 = vmatpush1.msra.mxu0 0.0
        %1677 = vmatprep.subr.mxu0 0.0
        %1678 = vmatpush1.msra.mxu0 0.0
        %1679 = vmatprep.subr.mxu0 0.0
        %1680 = vmatpush1.msra.mxu0 0.0
        %1681 = vmatprep.subr.mxu0 0.0
        %1682 = vmatpush1.msra.mxu0 0.0
        %1683 = vmatprep.subr.mxu0 0.0
        %1684 = vmatpush1.msra.mxu0 0.0
        %1685 = vmatprep.subr.mxu0 0.0
        %1686 = vmatpush1.msra.mxu0 0.0
        %1687 = vmatprep.subr.mxu0 0.0
        %1688 = vmatpush1.msra.mxu0 0.0
        %1689 = vmatprep.subr.mxu0 0.0
        %1690 = vmatpush1.msra.mxu0 0.0
        %1691 = vmatprep.subr.mxu0 0.0
        %1692 = vmatpush1.msra.mxu0 0.0
        %1693 = vmatprep.subr.mxu0 0.0
        %1694 = vmatpush1.msra.mxu0 0.0
        %1695 = vmatprep.subr.mxu0 0.0
        %1696 = vmatpush1.msra.mxu0 0.0
        %1697 = vmatprep.subr.mxu0 0.0
        %1698 = vmatpush1.msra.mxu0 0.0
        %1699 = vmatprep.subr.mxu0 0.0
        %1700 = vmatpush1.msra.mxu0 0.0
        %1701 = vmatprep.subr.mxu0 0.0
        %1702 = vmatpush1.msra.mxu0 0.0
        %1703 = vmatprep.subr.mxu0 0.0
        %1704 = vmatpush1.msra.mxu0 0.0
        %1705 = vmatprep.mubr.f32.mxu0 0.0
        %1706 = vmatmul.mubr.f32.gmra.mrb[0].mxu0 %v1639
        %v1707 = vpop.f32.mrb[0].mxu0
        %v1708 = vadd.f32 %v1626, %v1707
        %v1709 = vpop.f32.mrb[0].mxu0
        %1710 = vdwg.mxu0
        %v1711 = vadd.f32 %v1708, %v527
        %v1712 = vld [vmem:[%s234 + $0xe] sm:$0x1]
        %v1713 = vld [vmem:[%s234 + $0x1e] sm:$0x1]
        %v1714 = vld [vmem:[%s234 + $0x2e] sm:$0x1]
        %v1715 = vld [vmem:[%s234 + $0x3e] sm:$0x1]
        %v1716 = vld [vmem:[%s234 + $0xf] sm:$0x1]
        %v1717 = vld [vmem:[%s234 + $0x1f] sm:$0x1]
        %v1718 = vld [vmem:[%s234 + $0x2f] sm:$0x1]
        %v1719 = vld [vmem:[%s234 + $0x3f] sm:$0x1]
        %v1720 = vmul.f32 %v1712, %v295
        %v1721 = vmul.f32 %v1713, %v296
        %v1722 = vmul.f32 %v1714, %v297
        %v1723 = vmul.f32 %v1715, %v298
        %v1724 = vmul.f32 %v1716, %v309
        %v1725 = vmul.f32 %v1717, %v310
        %v1726 = vmul.f32 %v1718, %v311
        %v1727 = vmul.f32 %v1719, %v312
        %v1728 = vadd.f32 %v1720, %v1724
        %v1729 = vadd.f32 %v1721, %v1725
        %v1730 = vadd.f32 %v1722, %v1726
        %v1731 = vadd.f32 %v1723, %v1727
        %v1732 = vmul.f32 %v1712, %v327
        %v1733 = vmul.f32 %v1713, %v328
        %v1734 = vmul.f32 %v1714, %v329
        %v1735 = vmul.f32 %v1715, %v330
        %v1736 = vmul.f32 %v1716, %v341
        %v1737 = vmul.f32 %v1717, %v342
        %v1738 = vmul.f32 %v1718, %v343
        %v1739 = vmul.f32 %v1719, %v344
        %v1740 = vadd.f32 %v1732, %v1736
        %v1741 = vadd.f32 %v1733, %v1737
        %v1742 = vadd.f32 %v1734, %v1738
        %v1743 = vadd.f32 %v1735, %v1739
        %v1748 = vrot.slane %v1741, 7
        %v1749 = vsel %vm362, %v1748, %v1740
        %v1750 = vrot.slane %v1742, 6
        %v1751 = vsel %vm365, %v1750, %v1749
        %v1752 = vrot.slane %v1743, 5
        %v1753 = vsel %vm368, %v1752, %v1751
        %v1754 = vsel %vm370, %v1753, 0
        %1756 = vmatprep.subr.mxu0 0.0
        %1757 = vmatpush1.msra.mxu0 %v282
        %1758 = vmatprep.subr.mxu0 0.0
        %1759 = vmatpush1.msra.mxu0 %v283
        %1760 = vmatprep.subr.mxu0 0.0
        %1761 = vmatpush1.msra.mxu0 0.0
        %1762 = vmatprep.subr.mxu0 0.0
        %1763 = vmatpush1.msra.mxu0 0.0
        %1764 = vmatprep.subr.mxu0 0.0
        %1765 = vmatpush1.msra.mxu0 0.0
        %1766 = vmatprep.subr.mxu0 0.0
        %1767 = vmatpush1.msra.mxu0 0.0
        %1768 = vmatprep.subr.mxu0 0.0
        %1769 = vmatpush1.msra.mxu0 0.0
        %1770 = vmatprep.subr.mxu0 0.0
        %1771 = vmatpush1.msra.mxu0 0.0
        %1772 = vmatprep.subr.mxu0 0.0
        %1773 = vmatpush1.msra.mxu0 0.0
        %1774 = vmatprep.subr.mxu0 0.0
        %1775 = vmatpush1.msra.mxu0 0.0
        %1776 = vmatprep.subr.mxu0 0.0
        %1777 = vmatpush1.msra.mxu0 0.0
        %1778 = vmatprep.subr.mxu0 0.0
        %1779 = vmatpush1.msra.mxu0 0.0
        %1780 = vmatprep.subr.mxu0 0.0
        %1781 = vmatpush1.msra.mxu0 0.0
        %1782 = vmatprep.subr.mxu0 0.0
        %1783 = vmatpush1.msra.mxu0 0.0
        %1784 = vmatprep.subr.mxu0 0.0
        %1785 = vmatpush1.msra.mxu0 0.0
        %1786 = vmatprep.subr.mxu0 0.0
        %1787 = vmatpush1.msra.mxu0 0.0
        %1788 = vmatprep.subr.mxu0 0.0
        %1789 = vmatpush1.msra.mxu0 0.0
        %1790 = vmatprep.subr.mxu0 0.0
        %1791 = vmatpush1.msra.mxu0 0.0
        %1792 = vmatprep.subr.mxu0 0.0
        %1793 = vmatpush1.msra.mxu0 0.0
        %1794 = vmatprep.subr.mxu0 0.0
        %1795 = vmatpush1.msra.mxu0 0.0
        %1796 = vmatprep.subr.mxu0 0.0
        %1797 = vmatpush1.msra.mxu0 0.0
        %1798 = vmatprep.subr.mxu0 0.0
        %1799 = vmatpush1.msra.mxu0 0.0
        %1800 = vmatprep.subr.mxu0 0.0
        %1801 = vmatpush1.msra.mxu0 0.0
        %1802 = vmatprep.subr.mxu0 0.0
        %1803 = vmatpush1.msra.mxu0 0.0
        %1804 = vmatprep.subr.mxu0 0.0
        %1805 = vmatpush1.msra.mxu0 0.0
        %1806 = vmatprep.subr.mxu0 0.0
        %1807 = vmatpush1.msra.mxu0 0.0
        %1808 = vmatprep.subr.mxu0 0.0
        %1809 = vmatpush1.msra.mxu0 0.0
        %1810 = vmatprep.subr.mxu0 0.0
        %1811 = vmatpush1.msra.mxu0 0.0
        %1812 = vmatprep.subr.mxu0 0.0
        %1813 = vmatpush1.msra.mxu0 0.0
        %1814 = vmatprep.subr.mxu0 0.0
        %1815 = vmatpush1.msra.mxu0 0.0
        %1816 = vmatprep.subr.mxu0 0.0
        %1817 = vmatpush1.msra.mxu0 0.0
        %1818 = vmatprep.subr.mxu0 0.0
        %1819 = vmatpush1.msra.mxu0 0.0
        %1820 = vmatprep.mubr.f32.mxu0 0.0
        %1821 = vmatmul.mubr.f32.gmra.mrb[0].mxu0 %v1754
        %v1822 = vpop.f32.mrb[0].mxu0
        %v1823 = vadd.f32 0.0, %v1822
        %v1824 = vpop.f32.mrb[0].mxu0
        %1825 = vdwg.mxu0
        %v1830 = vrot.slane %v1729, 7
        %v1831 = vsel %vm362, %v1830, %v1728
        %v1832 = vrot.slane %v1730, 6
        %v1833 = vsel %vm365, %v1832, %v1831
        %v1834 = vrot.slane %v1731, 5
        %v1835 = vsel %vm368, %v1834, %v1833
        %v1836 = vsel %vm370, %v1835, 0
        %1838 = vmatprep.subr.mxu0 0.0
        %1839 = vmatpush1.msra.mxu0 %v280
        %1840 = vmatprep.subr.mxu0 0.0
        %1841 = vmatpush1.msra.mxu0 %v281
        %1842 = vmatprep.subr.mxu0 0.0
        %1843 = vmatpush1.msra.mxu0 0.0
        %1844 = vmatprep.subr.mxu0 0.0
        %1845 = vmatpush1.msra.mxu0 0.0
        %1846 = vmatprep.subr.mxu0 0.0
        %1847 = vmatpush1.msra.mxu0 0.0
        %1848 = vmatprep.subr.mxu0 0.0
        %1849 = vmatpush1.msra.mxu0 0.0
        %1850 = vmatprep.subr.mxu0 0.0
        %1851 = vmatpush1.msra.mxu0 0.0
        %1852 = vmatprep.subr.mxu0 0.0
        %1853 = vmatpush1.msra.mxu0 0.0
        %1854 = vmatprep.subr.mxu0 0.0
        %1855 = vmatpush1.msra.mxu0 0.0
        %1856 = vmatprep.subr.mxu0 0.0
        %1857 = vmatpush1.msra.mxu0 0.0
        %1858 = vmatprep.subr.mxu0 0.0
        %1859 = vmatpush1.msra.mxu0 0.0
        %1860 = vmatprep.subr.mxu0 0.0
        %1861 = vmatpush1.msra.mxu0 0.0
        %1862 = vmatprep.subr.mxu0 0.0
        %1863 = vmatpush1.msra.mxu0 0.0
        %1864 = vmatprep.subr.mxu0 0.0
        %1865 = vmatpush1.msra.mxu0 0.0
        %1866 = vmatprep.subr.mxu0 0.0
        %1867 = vmatpush1.msra.mxu0 0.0
        %1868 = vmatprep.subr.mxu0 0.0
        %1869 = vmatpush1.msra.mxu0 0.0
        %1870 = vmatprep.subr.mxu0 0.0
        %1871 = vmatpush1.msra.mxu0 0.0
        %1872 = vmatprep.subr.mxu0 0.0
        %1873 = vmatpush1.msra.mxu0 0.0
        %1874 = vmatprep.subr.mxu0 0.0
        %1875 = vmatpush1.msra.mxu0 0.0
        %1876 = vmatprep.subr.mxu0 0.0
        %1877 = vmatpush1.msra.mxu0 0.0
        %1878 = vmatprep.subr.mxu0 0.0
        %1879 = vmatpush1.msra.mxu0 0.0
        %1880 = vmatprep.subr.mxu0 0.0
        %1881 = vmatpush1.msra.mxu0 0.0
        %1882 = vmatprep.subr.mxu0 0.0
        %1883 = vmatpush1.msra.mxu0 0.0
        %1884 = vmatprep.subr.mxu0 0.0
        %1885 = vmatpush1.msra.mxu0 0.0
        %1886 = vmatprep.subr.mxu0 0.0
        %1887 = vmatpush1.msra.mxu0 0.0
        %1888 = vmatprep.subr.mxu0 0.0
        %1889 = vmatpush1.msra.mxu0 0.0
        %1890 = vmatprep.subr.mxu0 0.0
        %1891 = vmatpush1.msra.mxu0 0.0
        %1892 = vmatprep.subr.mxu0 0.0
        %1893 = vmatpush1.msra.mxu0 0.0
        %1894 = vmatprep.subr.mxu0 0.0
        %1895 = vmatpush1.msra.mxu0 0.0
        %1896 = vmatprep.subr.mxu0 0.0
        %1897 = vmatpush1.msra.mxu0 0.0
        %1898 = vmatprep.subr.mxu0 0.0
        %1899 = vmatpush1.msra.mxu0 0.0
        %1900 = vmatprep.subr.mxu0 0.0
        %1901 = vmatpush1.msra.mxu0 0.0
        %1902 = vmatprep.mubr.f32.mxu0 0.0
        %1903 = vmatmul.mubr.f32.gmra.mrb[0].mxu0 %v1836
        %v1904 = vpop.f32.mrb[0].mxu0
        %v1905 = vadd.f32 %v1823, %v1904
        %v1906 = vpop.f32.mrb[0].mxu0
        %1907 = vdwg.mxu0
        %v1908 = vadd.f32 %v1905, %v527
        %1910 = vrot.lane.b32.xlu0 %v726, 8
        %v1911 = vpop.permute.xlu0 %1910
        %1914 = vrot.lane.b32.xlu0 %v923, 16
        %v1915 = vpop.permute.xlu0 %1914
        %1918 = vrot.lane.b32.xlu0 %v1120, 24
        %v1919 = vpop.permute.xlu0 %1918
        %1922 = vrot.lane.b32.xlu0 %v1317, 32
        %v1923 = vpop.permute.xlu0 %1922
        %1926 = vrot.lane.b32.xlu0 %v1514, 40
        %v1927 = vpop.permute.xlu0 %1926
        %1930 = vrot.lane.b32.xlu0 %v1711, 48
        %v1931 = vpop.permute.xlu0 %1930
        %1934 = vrot.lane.b32.xlu0 %v1908, 56
        %v1935 = vpop.permute.xlu0 %1934
        %vm1937 = vcmask 64512
        %v1938 = vsel %vm1937, %v529, %v1911
        %v1939 = vsel %vm370, %v1938, %v1915
        %vm1940 = vcmask 195584
        %v1941 = vsel %vm1940, %v1939, %v1919
        %vm1942 = vcmask 261120
        %v1943 = vsel %vm1942, %v1941, %v1923
        %vm1944 = vcmask 326656
        %v1945 = vsel %vm1944, %v1943, %v1927
        %vm1946 = vcmask 392192
        %v1947 = vsel %vm1946, %v1945, %v1931
        %vm1948 = vcmask 457728
        %v1949 = vsel %vm1948, %v1947, %v1935
        %vm1950 = vcmask 519168
        %1951 = vst.msk [vmem:[%s274] sm:$0xf] %vm1950, %v1949
        %p1952 = scmp.eq.s32.totalorder %s25, 0
        // Predicated region
        $region41: #{down_block.2} parent=35 // pred_check
          %p1953 = pneg %p1952
        $region42: #{down_block.2} parent=35 // pred_check_branch
          %1955 = sbr.rel (%p1953) target = $region44
        $region43: #{down_block.2} parent=35 // pred_region
          %vm1956 = vcmask 11264
          %1957 = vst.msk [vmem:[%s278] sm:$0xf] %vm1956, 0.0
        $region44: #{down_block.2} parent=35 // pred_fallthru
          _
        %v1958 = vld [vmem:[%s278] sm:$0xf]
        %v1959 = vsel %vm1950, %v1949, 0.0
        %1960 = vadd.xlane.f32.xlu0 %v1959
        %v1961 = vpop.xlane.xlu0 %1960
        %v1962 = vadd.f32 %v1958, %v1961
        %vm1963 = vcmask 3072
        %1964 = vst.msk [vmem:[%s278] sm:$0xf] %vm1963, %v1962
        %v1965 = vld [vmem:[%s278] sm:$0xf]
        %v1966 = vmul.f32 %v1949, %v1949
        %v1967 = vsel %vm1950, %v1966, 0.0
        %1968 = vadd.xlane.f32.xlu0 %v1967
        %v1969 = vpop.xlane.xlu0 %1968
        %v1970 = vadd.f32 %v1965, %v1969
        %vm1971 = vcmask 11272
        %1972 = vst.msk [vmem:[%s278] sm:$0xf] %vm1971, %v1970
        %p1973 = scmp.lt.s32.totalorder %s24, 1
        %s1974 = scalar_select %p1973, %s24, 1
        %p1975 = scmp.lt.s32.totalorder %s25, 0
        %s1976 = scalar_select %p1975, %s25, 0
        %s1977 = sadd.s32 %s1976, %s1974
        %s1978 = smul.addr %s1977, 4
        %s1979 = scalar_lea.vmem %s4, %s1978
        %p1980 = scmp.lt.s32.totalorder %s24, 1
        %s1981 = scalar_select %p1980, %s24, 1
        %s1982 = smul.addr %s1981, 4
        %s1983 = scalar_lea.vmem %s5, %s1982
        // Predicated region
        $region45: #{down_block.2} parent=35 // pred_check
          %p1984 = pneg %p143
        $region46: #{down_block.2} parent=35 // pred_check_branch
          %1986 = sbr.rel (%p1984) target = $region48
        $region47: #{down_block.2} parent=35 // pred_region
          _
        $region48: #{down_block.2} parent=35 // pred_fallthru
          _
        // Predicated region
        $region49: #{down_block.2} parent=35 // pred_check
          %p1987 = pneg %p169
        $region50: #{down_block.2} parent=35 // pred_check_branch
          %1989 = sbr.rel (%p1987) target = $region52
        $region51: #{down_block.2} parent=35 // pred_region
          _
        $region52: #{down_block.2} parent=35 // pred_fallthru
          _
      $region36: #{down_block.2} parent=5 // pred_fallthru
        _
      %p1990 = scmp.le.s32.totalorder 2, %s15
      // Predicated region
      $region53: #{down_block.2} parent=5 // pred_check
        %p1991 = pneg %p1990
      $region54: #{down_block.2} parent=5 // pred_check_branch
        %1993 = sbr.rel (%p1991) target = $region56
      $region55: #{down_block.2} parent=5 // pred_region
        %s1994 = ssub.s32 %s15, 2
        // Predicated region
        $region57: #{down_block.2} parent=55 // pred_check
          %p1995 = pneg %p149
        $region58: #{down_block.2} parent=55 // pred_check_branch
          %1997 = sbr.rel (%p1995) target = $region60
        $region59: #{down_block.2} parent=55 // pred_region
          %p1998 = scmp.lt.s32.totalorder %s26, 1
          %s1999 = scalar_select %p1998, %s26, 1
          %p2000 = scmp.lt.s32.totalorder %s27, 0
          %s2001 = scalar_select %p2000, %s27, 0
          %s2002 = sadd.s32 %s2001, %s1999
          %s2003 = smul.addr %s2002, 4
          %s2004 = scalar_lea.vmem %s4, %s2003
        $region60: #{down_block.2} parent=55 // pred_fallthru
          _
        // Predicated region
        $region61: #{down_block.2} parent=55 // pred_check
          %p2005 = pneg %p175
        $region62: #{down_block.2} parent=55 // pred_check_branch
          %2007 = sbr.rel (%p2005) target = $region64
        $region63: #{down_block.2} parent=55 // pred_region
          %p2008 = scmp.lt.s32.totalorder %s26, 1
          %s2009 = scalar_select %p2008, %s26, 1
          %s2010 = smul.addr %s2009, 4
          %s2011 = scalar_lea.vmem %s5, %s2010
        $region64: #{down_block.2} parent=55 // pred_fallthru
          _
      $region56: #{down_block.2} parent=5 // pred_fallthru
        _
    $region6: #{down_block.2} parent=1 // loop_footer
      %s19 = sadd.s32 1, %s15
    $region7: #{down_block.2} parent=1 // loop_footer_branch
      %14 = sbr.rel target = $region3
    $region8: #{down_block.2} parent=1 // loop_exit
      _
    %2012 = vsyncpa [#allocation3], 1
    %s2013 = scalar_lea.sflag [#allocation3], 1
    %2014 = vsyncpa %s2013, 1

</llo_original>
